<compile_context>
chip_gen: v5e
topology: v5e:2x2
jax: 0.10.0
libtpu: 0.0.40
codegen_flags: <defaults>
</compile_context>

<pallas_src>
import functools

import jax
import jax.numpy as jnp
from jax.experimental import pallas as pl
from jax.experimental.pallas import tpu as pltpu

K_IN = 28 * 28          # 784 (multiple of 8; no K padding needed)
H1, H2 = 512, 256
N_OUT = 10
N_PAD = 128             # lane-dense output width; logits sliced [:, :10] in wrapper


def _fc_mlp_kernel(x_ref, w1_ref, b1_ref, w2_ref, b2_ref, w3_ref, b3_ref, o_ref):
    # bf16 MXU inputs, f32 accumulation; bias + ReLU on the f32 accumulator.
    x = x_ref[...].astype(jnp.bfloat16)                                # (TB, 784)
    h1 = jnp.dot(x, w1_ref[...], preferred_element_type=jnp.float32)
    h1 = jnp.maximum(h1 + b1_ref[...], 0.0)                            # f32 ReLU
    # (Dropout(0.2) -> identity in eval mode)
    h2 = jnp.dot(h1.astype(jnp.bfloat16), w2_ref[...],
                 preferred_element_type=jnp.float32)
    h2 = jnp.maximum(h2 + b2_ref[...], 0.0)                            # f32 ReLU
    # (Dropout(0.2) -> identity in eval mode)
    out = jnp.dot(h2.astype(jnp.bfloat16), w3_ref[...],
                  preferred_element_type=jnp.float32)
    o_ref[...] = (out + b3_ref[...]).astype(o_ref.dtype)               # (TB, 128)


def _pick_tb(batch, tb_max=512, sublane=16):
    """Balanced batch tile: even split over grid steps, >=2 steps for megacore."""
    n_steps = max(1, -(-batch // tb_max))
    if batch > 128:
        n_steps = max(n_steps, 2)        # v7x: give both TensorCores work
    if n_steps == 1:
        return batch                     # block dim == full array dim (always legal)
    tb = -(-batch // n_steps)
    return -(-tb // sublane) * sublane   # bf16 sublane multiple


@functools.partial(jax.jit, static_argnames=("tb_max",))
def fc_model_forward(x_nchw, params, tb_max=512):
    """x_nchw: (B, 1, 28, 28) float32 -> logits (B, 10) float32."""
    w1, b1, w2, b2, w3, b3 = params
    B = x_nchw.shape[0]
    x_flat = x_nchw.reshape(B, -1)                  # nn.Flatten -> (B, 784), no copy
    assert x_flat.shape[1] == K_IN

    tb = _pick_tb(B, tb_max)
    grid = (pl.cdiv(B, tb),)

    # Weights -> bf16 once in the wrapper; only the last layer is lane-padded
    # 10 -> 128 with zero columns (math unchanged). Biases stay f32.
    bf = jnp.bfloat16
    w1_b = w1.astype(bf)                                           # (784, 512)
    w2_b = w2.astype(bf)                                           # (512, 256)
    w3_b = jnp.pad(w3, ((0, 0), (0, N_PAD - N_OUT))).astype(bf)    # (256, 128)
    b3_p = jnp.pad(b3, ((0, 0), (0, N_PAD - N_OUT)))               # (1, 128)

    # Weights stay VMEM-resident across grid steps (constant index_map).
    resident = lambda shape: pl.BlockSpec(shape, lambda i: (0, 0))

    flops = 2 * B * (K_IN * H1 + H1 * H2 + H2 * N_PAD)
    bytes_accessed = (4 * B * K_IN + 4 * B * N_PAD                 # x read, out write
                      + 2 * (K_IN * H1 + H1 * H2 + H2 * N_PAD)     # bf16 weights
                      + 4 * (H1 + H2 + N_PAD))                     # f32 biases

    out_pad = pl.pallas_call(
        _fc_mlp_kernel,
        out_shape=jax.ShapeDtypeStruct((B, N_PAD), jnp.float32),
        grid=grid,
        in_specs=[
            pl.BlockSpec((tb, K_IN), lambda i: (i, 0)),    # activations, batch-tiled
            resident((K_IN, H1)), resident((1, H1)),
            resident((H1, H2)), resident((1, H2)),
            resident((H2, N_PAD)), resident((1, N_PAD)),
        ],
        out_specs=pl.BlockSpec((tb, N_PAD), lambda i: (i, 0)),
        compiler_params=pltpu.CompilerParams(
            dimension_semantics=("parallel",),   # megacore shard over batch tiles
            vmem_limit_bytes=32 << 20,
        ),
        cost_estimate=pl.CostEstimate(
            flops=flops, transcendentals=0, bytes_accessed=bytes_accessed),
    )(x_flat, w1_b, b1, w2_b, b2, w3_b, b3_p)

    return out_pad[:, :N_OUT]


def init_params(key):
    """Deterministic init mimicking nn.Linear default (U(-1/sqrt(fan_in), +))."""
    ks = jax.random.split(key, 6)

    def linear(kw, kb, fan_in, fan_out):
        bound = 1.0 / jnp.sqrt(fan_in)
        w = jax.random.uniform(kw, (fan_in, fan_out), jnp.float32, -bound, bound)
        b = jax.random.uniform(kb, (1, fan_out), jnp.float32, -bound, bound)
        return w, b

    w1, b1 = linear(ks[0], ks[1], K_IN, H1)
    w2, b2 = linear(ks[2], ks[3], H1, H2)
    w3, b3 = linear(ks[4], ks[5], H2, N_OUT)
    return (w1, b1, w2, b2, w3, b3)


def reference_forward(x_nchw, params):
    """Reference matching the kernel's numerics: bf16 matmul inputs, f32 accumulate."""
    w1, b1, w2, b2, w3, b3 = params
    bf = jnp.bfloat16
    x = x_nchw.reshape(x_nchw.shape[0], -1)
    h1 = jnp.maximum(jnp.dot(x.astype(bf), w1.astype(bf),
                             preferred_element_type=jnp.float32) + b1, 0.0)
    h2 = jnp.maximum(jnp.dot(h1.astype(bf), w2.astype(bf),
                             preferred_element_type=jnp.float32) + b2, 0.0)
    return jnp.dot(h2.astype(bf), w3.astype(bf),
                   preferred_element_type=jnp.float32) + b3


if __name__ == "__main__":
    key = jax.random.PRNGKey(0)
    k_params, k_x = jax.random.split(key)

    params = init_params(k_params)
    # MNIST-style input: batch=2, NCHW (2, 1, 28, 28)
    x = jax.random.normal(k_x, (2, 1, 28, 28), dtype=jnp.float32)

    out = jax.block_until_ready(fc_model_forward(x, params))
    ref = reference_forward(x, params)
    assert out.shape == (2, 10)
    assert jnp.allclose(out, ref, atol=2e-2, rtol=2e-2)

    # Ragged batch spanning >=2 grid steps: exercises the partial edge tile and
    # the megacore (2-tile) split on v7x.
    x_big = jax.random.normal(k_x, (300, 1, 28, 28), dtype=jnp.float32)
    out_big = jax.block_until_ready(fc_model_forward(x_big, params))
    ref_big = reference_forward(x_big, params)
    assert out_big.shape == (300, 10)
    assert jnp.allclose(out_big, ref_big, atol=2e-2, rtol=2e-2)

    print("KERNEL_OK")
</pallas_src>

<mosaic_0001>
module attributes {stable_mosaic.version = 11 : i64} {
  func.func @_fc_mlp_kernel(%arg0: i32, %arg1: memref<2x784xf32, #tpu.memory_space<vmem>>, %arg2: memref<784x512xbf16, #tpu.memory_space<vmem>>, %arg3: memref<1x512xf32, #tpu.memory_space<vmem>>, %arg4: memref<512x256xbf16, #tpu.memory_space<vmem>>, %arg5: memref<1x256xf32, #tpu.memory_space<vmem>>, %arg6: memref<256x128xbf16, #tpu.memory_space<vmem>>, %arg7: memref<1x128xf32, #tpu.memory_space<vmem>>, %arg8: memref<2x128xf32, #tpu.memory_space<vmem>>) attributes {dimension_semantics = [#tpu.dimension_semantics<parallel>], iteration_bounds = array<i64: 1>, scalar_prefetch = 0 : i64, scratch_operands = 0 : i64, tpu.core_type = #tpu.core_type<tc>, window_params = [{transform_indices = @transform_0, window_bounds = array<i64: 2, 784>}, {pipeline_mode = #tpu.pipeline_mode<synchronous>, transform_indices = @transform_1, window_bounds = array<i64: 784, 512>}, {pipeline_mode = #tpu.pipeline_mode<synchronous>, transform_indices = @transform_2, window_bounds = array<i64: 1, 512>}, {pipeline_mode = #tpu.pipeline_mode<synchronous>, transform_indices = @transform_3, window_bounds = array<i64: 512, 256>}, {pipeline_mode = #tpu.pipeline_mode<synchronous>, transform_indices = @transform_4, window_bounds = array<i64: 1, 256>}, {pipeline_mode = #tpu.pipeline_mode<synchronous>, transform_indices = @transform_5, window_bounds = array<i64: 256, 128>}, {pipeline_mode = #tpu.pipeline_mode<synchronous>, transform_indices = @transform_6, window_bounds = array<i64: 1, 128>}, {transform_indices = @transform_7, window_bounds = array<i64: 2, 128>}]} {
    %c0 = arith.constant 0 : index
    %c0_0 = arith.constant 0 : index
    %0 = vector.load %arg1[%c0, %c0_0] : memref<2x784xf32, #tpu.memory_space<vmem>>, vector<2x784xf32>
    %1 = arith.truncf %0 : vector<2x784xf32> to vector<2x784xbf16>
    %c0_1 = arith.constant 0 : index
    %c0_2 = arith.constant 0 : index
    %2 = vector.load %arg2[%c0_1, %c0_2] : memref<784x512xbf16, #tpu.memory_space<vmem>>, vector<784x512xbf16>
    %cst = arith.constant dense<0.000000e+00> : vector<2x512xf32>
    %3 = tpu.matmul %1, %2, %cst {dimension_numbers = #tpu.dot_dimension_numbers<[1], [0], [0], [1], [0, 0, 1, 1], [], []>} : vector<2x784xbf16>, vector<784x512xbf16>, vector<2x512xf32> -> vector<2x512xf32>
    %c0_3 = arith.constant 0 : index
    %c0_4 = arith.constant 0 : index
    %4 = vector.load %arg3[%c0_3, %c0_4] : memref<1x512xf32, #tpu.memory_space<vmem>>, vector<1x512xf32>
    %5 = vector.broadcast %4 : vector<1x512xf32> to vector<2x512xf32>
    %6 = arith.addf %3, %5 : vector<2x512xf32>
    %cst_5 = arith.constant 0.000000e+00 : f32
    %7 = vector.broadcast %cst_5 : f32 to vector<2x512xf32>
    %8 = arith.maximumf %6, %7 : vector<2x512xf32>
    %9 = arith.truncf %8 : vector<2x512xf32> to vector<2x512xbf16>
    %c0_6 = arith.constant 0 : index
    %c0_7 = arith.constant 0 : index
    %10 = vector.load %arg4[%c0_6, %c0_7] : memref<512x256xbf16, #tpu.memory_space<vmem>>, vector<512x256xbf16>
    %cst_8 = arith.constant dense<0.000000e+00> : vector<2x256xf32>
    %11 = tpu.matmul %9, %10, %cst_8 {dimension_numbers = #tpu.dot_dimension_numbers<[1], [0], [0], [1], [0, 0, 1, 1], [], []>} : vector<2x512xbf16>, vector<512x256xbf16>, vector<2x256xf32> -> vector<2x256xf32>
    %c0_9 = arith.constant 0 : index
    %c0_10 = arith.constant 0 : index
    %12 = vector.load %arg5[%c0_9, %c0_10] : memref<1x256xf32, #tpu.memory_space<vmem>>, vector<1x256xf32>
    %13 = vector.broadcast %12 : vector<1x256xf32> to vector<2x256xf32>
    %14 = arith.addf %11, %13 : vector<2x256xf32>
    %cst_11 = arith.constant 0.000000e+00 : f32
    %15 = vector.broadcast %cst_11 : f32 to vector<2x256xf32>
    %16 = arith.maximumf %14, %15 : vector<2x256xf32>
    %17 = arith.truncf %16 : vector<2x256xf32> to vector<2x256xbf16>
    %c0_12 = arith.constant 0 : index
    %c0_13 = arith.constant 0 : index
    %18 = vector.load %arg6[%c0_12, %c0_13] : memref<256x128xbf16, #tpu.memory_space<vmem>>, vector<256x128xbf16>
    %cst_14 = arith.constant dense<0.000000e+00> : vector<2x128xf32>
    %19 = tpu.matmul %17, %18, %cst_14 {dimension_numbers = #tpu.dot_dimension_numbers<[1], [0], [0], [1], [0, 0, 1, 1], [], []>} : vector<2x256xbf16>, vector<256x128xbf16>, vector<2x128xf32> -> vector<2x128xf32>
    %c0_15 = arith.constant 0 : index
    %c0_16 = arith.constant 0 : index
    %20 = vector.load %arg7[%c0_15, %c0_16] : memref<1x128xf32, #tpu.memory_space<vmem>>, vector<1x128xf32>
    %21 = vector.broadcast %20 : vector<1x128xf32> to vector<2x128xf32>
    %22 = arith.addf %19, %21 : vector<2x128xf32>
    %c0_17 = arith.constant 0 : index
    %c0_18 = arith.constant 0 : index
    %23 = vector.load %arg8[%c0_17, %c0_18] : memref<2x128xf32, #tpu.memory_space<vmem>>, vector<2x128xf32>
    tpu.vector_store %arg8[%c0_17, %c0_18], %22 {strides = array<i32>} : memref<2x128xf32, #tpu.memory_space<vmem>>, vector<2x128xf32>,
    return
  }
  func.func @transform_0(%arg0: i32) -> (i32, i32) {
    %c0_i32 = arith.constant 0 : i32
    %c0_i32_0 = arith.constant 0 : i32
    return %arg0, %c0_i32 : i32, i32
  }
  func.func @transform_1(%arg0: i32) -> (i32, i32) {
    %c0_i32 = arith.constant 0 : i32
    %c0_i32_0 = arith.constant 0 : i32
    %c0_i32_1 = arith.constant 0 : i32
    return %c0_i32, %c0_i32_0 : i32, i32
  }
  func.func @transform_2(%arg0: i32) -> (i32, i32) {
    %c0_i32 = arith.constant 0 : i32
    %c0_i32_0 = arith.constant 0 : i32
    %c0_i32_1 = arith.constant 0 : i32
    return %c0_i32, %c0_i32_0 : i32, i32
  }
  func.func @transform_3(%arg0: i32) -> (i32, i32) {
    %c0_i32 = arith.constant 0 : i32
    %c0_i32_0 = arith.constant 0 : i32
    %c0_i32_1 = arith.constant 0 : i32
    return %c0_i32, %c0_i32_0 : i32, i32
  }
  func.func @transform_4(%arg0: i32) -> (i32, i32) {
    %c0_i32 = arith.constant 0 : i32
    %c0_i32_0 = arith.constant 0 : i32
    %c0_i32_1 = arith.constant 0 : i32
    return %c0_i32, %c0_i32_0 : i32, i32
  }
  func.func @transform_5(%arg0: i32) -> (i32, i32) {
    %c0_i32 = arith.constant 0 : i32
    %c0_i32_0 = arith.constant 0 : i32
    %c0_i32_1 = arith.constant 0 : i32
    return %c0_i32, %c0_i32_0 : i32, i32
  }
  func.func @transform_6(%arg0: i32) -> (i32, i32) {
    %c0_i32 = arith.constant 0 : i32
    %c0_i32_0 = arith.constant 0 : i32
    %c0_i32_1 = arith.constant 0 : i32
    return %c0_i32, %c0_i32_0 : i32, i32
  }
  func.func @transform_7(%arg0: i32) -> (i32, i32) {
    %c0_i32 = arith.constant 0 : i32
    %c0_i32_0 = arith.constant 0 : i32
    return %arg0, %c0_i32 : i32, i32
  }
}

</mosaic_0001>

<llo_original>
// kernel: fc_model_forward.1
$region0: #{fc_model_forward.1}
  #allocation0 [shape = 'u32[]', space=smem, size = 0x4, offset = 0x4, fixed_abs, tag = 'smem constant byte address 0x4 - core index']
  #allocation1 [shape = 'u32[72,128]{1,0:T(1,128)}', space=vmem, size = 0x9000, scoped, tag = 'internal scratch']
  %s0 = inlined_call_operand.vmem [shape: f32[2,784], index: 0, kind: input, shape index: {}]
  %s1 = inlined_call_operand.vmem [shape: bf16[784,512], index: 1, kind: input, shape index: {}]
  %s2 = inlined_call_operand.vmem [shape: f32[1,512], index: 2, kind: input, shape index: {}]
  %s3 = inlined_call_operand.vmem [shape: bf16[512,256], index: 3, kind: input, shape index: {}]
  %s4 = inlined_call_operand.vmem [shape: f32[1,256], index: 4, kind: input, shape index: {}]
  %s5 = inlined_call_operand.vmem [shape: bf16[256,128], index: 5, kind: input, shape index: {}]
  %s6 = inlined_call_operand.vmem [shape: f32[1,128], index: 6, kind: input, shape index: {}]
  %s7 = inlined_call_operand.hbm [shape: f32[2,128], index: 7, kind: output, shape index: {}]
  %s8 = sld [smem:[#allocation0]]
  $region38: #{fc_model_forward.1} parent=0
    _
  %s10 = ssub.s32 1, %s8
  %s11 = scalar_select 0, %s10, %s8
  $region1: #{fc_model_forward.1} parent=0
    #allocation2 [shape = 'u8[1024]{0}', space=vmem, size = 0x400, scoped, tag = 'output window, operand 0, single buffered']
    #allocation3 [shape = 's32[1]{0}', space=sflag, size = 0x4, scoped, tag = 'scoped memory for fc_model_forward.1']
    %12 = vsyncpa [#allocation3], 0
    // Predicated region
    $region2: #{fc_model_forward.1} parent=1 // pred_check
      _
    $region3: #{fc_model_forward.1} parent=1 // pred_check_branch
      %14 = sbr.rel (0) target = $region5
    $region4: #{fc_model_forward.1} parent=1 // pred_region
      _
    $region5: #{fc_model_forward.1} parent=1 // pred_fallthru
      _
    // Predicated region
    $region6: #{fc_model_forward.1} parent=1 // pred_check
      _
    $region7: #{fc_model_forward.1} parent=1 // pred_check_branch
      %16 = sbr.rel (0) target = $region9
    $region8: #{fc_model_forward.1} parent=1 // pred_region
      _
    $region9: #{fc_model_forward.1} parent=1 // pred_fallthru
      _
    // Predicated region
    $region10: #{fc_model_forward.1} parent=1 // pred_check
      _
    $region11: #{fc_model_forward.1} parent=1 // pred_check_branch
      %18 = sbr.rel (0) target = $region13
    $region12: #{fc_model_forward.1} parent=1 // pred_region
      _
    $region13: #{fc_model_forward.1} parent=1 // pred_fallthru
      _
    // Predicated region
    $region14: #{fc_model_forward.1} parent=1 // pred_check
      _
    $region15: #{fc_model_forward.1} parent=1 // pred_check_branch
      %20 = sbr.rel (0) target = $region17
    $region16: #{fc_model_forward.1} parent=1 // pred_region
      _
    $region17: #{fc_model_forward.1} parent=1 // pred_fallthru
      _
    // Predicated region
    $region18: #{fc_model_forward.1} parent=1 // pred_check
      _
    $region19: #{fc_model_forward.1} parent=1 // pred_check_branch
      %22 = sbr.rel (0) target = $region21
    $region20: #{fc_model_forward.1} parent=1 // pred_region
      _
    $region21: #{fc_model_forward.1} parent=1 // pred_fallthru
      _
    // Predicated region
    $region22: #{fc_model_forward.1} parent=1 // pred_check
      _
    $region23: #{fc_model_forward.1} parent=1 // pred_check_branch
      %24 = sbr.rel (0) target = $region25
    $region24: #{fc_model_forward.1} parent=1 // pred_region
      _
    $region25: #{fc_model_forward.1} parent=1 // pred_fallthru
      _
    // Predicated region
    $region26: #{fc_model_forward.1} parent=1 // pred_check
      _
    $region27: #{fc_model_forward.1} parent=1 // pred_check_branch
      %26 = sbr.rel (0) target = $region29
    $region28: #{fc_model_forward.1} parent=1 // pred_region
      _
    $region29: #{fc_model_forward.1} parent=1 // pred_fallthru
      _
    %v28 = vld [vmem:[%s0] sm:$0xff]
    %v29 = vld [vmem:[%s0 + $0x8] sm:$0x3f]
    %32 = vst [vmem:[#allocation1] ss:$4 sm:$0xff] %v28
    %s33 = scalar_lea.vmem [#allocation1], 32
    %34 = vst [vmem:[%s33] ss:$4 sm:$0xff] %v29
    %v35 = vld.sshfl [vmem:[#allocation1] sm:$0xff pattern:$0x73625140]
    %v36 = vld.sshfl [vmem:[#allocation1 + $0x8] sm:$0xff pattern:$0x73625140]
    %v37 = vld.sshfl [vmem:[#allocation1 + $0x10] sm:$0xff pattern:$0x73625140]
    %v38 = vld.sshfl [vmem:[#allocation1 + $0x18] sm:$0xff pattern:$0x73625140]
    %v39 = vld.sshfl [vmem:[#allocation1 + $0x20] sm:$0xff pattern:$0x73625140]
    %v40 = vld.sshfl [vmem:[#allocation1 + $0x28] sm:$0xff pattern:$0x73625140]
    %v41 = vld.sshfl [vmem:[#allocation1 + $0x30] sm:$0xff pattern:$0x73625140]
    %v49 = vpack.c.bf16 %v35, %v35
    %v50 = vpack.c.bf16 %v36, %v36
    %v51 = vpack.c.bf16 %v37, %v37
    %v52 = vpack.c.bf16 %v38, %v38
    %v53 = vpack.c.bf16 %v39, %v39
    %v54 = vpack.c.bf16 %v40, %v40
    %v55 = vpack.c.bf16 %v41, %v41
    %v56 = vld [vmem:[%s1] sm:$0xff]
    %v57 = vld [vmem:[%s1 + $0x8] sm:$0xff]
    %v58 = vld [vmem:[%s1 + $0x10] sm:$0xff]
    %v59 = vld [vmem:[%s1 + $0x18] sm:$0xff]
    %v60 = vld [vmem:[%s1 + $0x20] sm:$0xff]
    %v61 = vld [vmem:[%s1 + $0x28] sm:$0xff]
    %v62 = vld [vmem:[%s1 + $0x30] sm:$0xff]
    %v63 = vld [vmem:[%s1 + $0x38] sm:$0xff]
    %v64 = vld [vmem:[%s1 + $0x40] sm:$0xff]
    %v65 = vld [vmem:[%s1 + $0x48] sm:$0xff]
    %v66 = vld [vmem:[%s1 + $0x50] sm:$0xff]
    %v67 = vld [vmem:[%s1 + $0x58] sm:$0xff]
    %v68 = vld [vmem:[%s1 + $0x60] sm:$0xff]
    %v69 = vld [vmem:[%s1 + $0x68] sm:$0xff]
    %v70 = vld [vmem:[%s1 + $0x70] sm:$0xff]
    %v71 = vld [vmem:[%s1 + $0x78] sm:$0xff]
    %v72 = vld [vmem:[%s1 + $0x80] sm:$0xff]
    %v73 = vld [vmem:[%s1 + $0x88] sm:$0xff]
    %v74 = vld [vmem:[%s1 + $0x90] sm:$0xff]
    %v75 = vld [vmem:[%s1 + $0x98] sm:$0xff]
    %v76 = vld [vmem:[%s1 + $0xa0] sm:$0xff]
    %v77 = vld [vmem:[%s1 + $0xa8] sm:$0xff]
    %v78 = vld [vmem:[%s1 + $0xb0] sm:$0xff]
    %v79 = vld [vmem:[%s1 + $0xb8] sm:$0xff]
    %v80 = vld [vmem:[%s1 + $0xc0] sm:$0xff]
    %v81 = vld [vmem:[%s1 + $0xc8] sm:$0xff]
    %v82 = vld [vmem:[%s1 + $0xd0] sm:$0xff]
    %v83 = vld [vmem:[%s1 + $0xd8] sm:$0xff]
    %v84 = vld [vmem:[%s1 + $0xe0] sm:$0xff]
    %v85 = vld [vmem:[%s1 + $0xe8] sm:$0xff]
    %v86 = vld [vmem:[%s1 + $0xf0] sm:$0xff]
    %v87 = vld [vmem:[%s1 + $0xf8] sm:$0xff]
    %v88 = vld [vmem:[%s1 + $0x100] sm:$0xff]
    %v89 = vld [vmem:[%s1 + $0x108] sm:$0xff]
    %v90 = vld [vmem:[%s1 + $0x110] sm:$0xff]
    %v91 = vld [vmem:[%s1 + $0x118] sm:$0xff]
    %v92 = vld [vmem:[%s1 + $0x120] sm:$0xff]
    %v93 = vld [vmem:[%s1 + $0x128] sm:$0xff]
    %v94 = vld [vmem:[%s1 + $0x130] sm:$0xff]
    %v95 = vld [vmem:[%s1 + $0x138] sm:$0xff]
    %v96 = vld [vmem:[%s1 + $0x140] sm:$0xff]
    %v97 = vld [vmem:[%s1 + $0x148] sm:$0xff]
    %v98 = vld [vmem:[%s1 + $0x150] sm:$0xff]
    %v99 = vld [vmem:[%s1 + $0x158] sm:$0xff]
    %v100 = vld [vmem:[%s1 + $0x160] sm:$0xff]
    %v101 = vld [vmem:[%s1 + $0x168] sm:$0xff]
    %v102 = vld [vmem:[%s1 + $0x170] sm:$0xff]
    %v103 = vld [vmem:[%s1 + $0x178] sm:$0xff]
    %v104 = vld [vmem:[%s1 + $0x180] sm:$0xff]
    %v105 = vld [vmem:[%s1 + $0x188] sm:$0xff]
    %v106 = vld [vmem:[%s1 + $0x190] sm:$0xff]
    %v107 = vld [vmem:[%s1 + $0x198] sm:$0xff]
    %v108 = vld [vmem:[%s1 + $0x1a0] sm:$0xff]
    %v109 = vld [vmem:[%s1 + $0x1a8] sm:$0xff]
    %v110 = vld [vmem:[%s1 + $0x1b0] sm:$0xff]
    %v111 = vld [vmem:[%s1 + $0x1b8] sm:$0xff]
    %v112 = vld [vmem:[%s1 + $0x1c0] sm:$0xff]
    %v113 = vld [vmem:[%s1 + $0x1c8] sm:$0xff]
    %v114 = vld [vmem:[%s1 + $0x1d0] sm:$0xff]
    %v115 = vld [vmem:[%s1 + $0x1d8] sm:$0xff]
    %v116 = vld [vmem:[%s1 + $0x1e0] sm:$0xff]
    %v117 = vld [vmem:[%s1 + $0x1e8] sm:$0xff]
    %v118 = vld [vmem:[%s1 + $0x1f0] sm:$0xff]
    %v119 = vld [vmem:[%s1 + $0x1f8] sm:$0xff]
    %v120 = vld [vmem:[%s1 + $0x200] sm:$0xff]
    %v121 = vld [vmem:[%s1 + $0x208] sm:$0xff]
    %v122 = vld [vmem:[%s1 + $0x210] sm:$0xff]
    %v123 = vld [vmem:[%s1 + $0x218] sm:$0xff]
    %v124 = vld [vmem:[%s1 + $0x220] sm:$0xff]
    %v125 = vld [vmem:[%s1 + $0x228] sm:$0xff]
    %v126 = vld [vmem:[%s1 + $0x230] sm:$0xff]
    %v127 = vld [vmem:[%s1 + $0x238] sm:$0xff]
    %v128 = vld [vmem:[%s1 + $0x240] sm:$0xff]
    %v129 = vld [vmem:[%s1 + $0x248] sm:$0xff]
    %v130 = vld [vmem:[%s1 + $0x250] sm:$0xff]
    %v131 = vld [vmem:[%s1 + $0x258] sm:$0xff]
    %v132 = vld [vmem:[%s1 + $0x260] sm:$0xff]
    %v133 = vld [vmem:[%s1 + $0x268] sm:$0xff]
    %v134 = vld [vmem:[%s1 + $0x270] sm:$0xff]
    %v135 = vld [vmem:[%s1 + $0x278] sm:$0xff]
    %v136 = vld [vmem:[%s1 + $0x280] sm:$0xff]
    %v137 = vld [vmem:[%s1 + $0x288] sm:$0xff]
    %v138 = vld [vmem:[%s1 + $0x290] sm:$0xff]
    %v139 = vld [vmem:[%s1 + $0x298] sm:$0xff]
    %v140 = vld [vmem:[%s1 + $0x2a0] sm:$0xff]
    %v141 = vld [vmem:[%s1 + $0x2a8] sm:$0xff]
    %v142 = vld [vmem:[%s1 + $0x2b0] sm:$0xff]
    %v143 = vld [vmem:[%s1 + $0x2b8] sm:$0xff]
    %v144 = vld [vmem:[%s1 + $0x2c0] sm:$0xff]
    %v145 = vld [vmem:[%s1 + $0x2c8] sm:$0xff]
    %v146 = vld [vmem:[%s1 + $0x2d0] sm:$0xff]
    %v147 = vld [vmem:[%s1 + $0x2d8] sm:$0xff]
    %v148 = vld [vmem:[%s1 + $0x2e0] sm:$0xff]
    %v149 = vld [vmem:[%s1 + $0x2e8] sm:$0xff]
    %v150 = vld [vmem:[%s1 + $0x2f0] sm:$0xff]
    %v151 = vld [vmem:[%s1 + $0x2f8] sm:$0xff]
    %v152 = vld [vmem:[%s1 + $0x300] sm:$0xff]
    %v153 = vld [vmem:[%s1 + $0x308] sm:$0xff]
    %v154 = vld [vmem:[%s1 + $0x310] sm:$0xff]
    %v155 = vld [vmem:[%s1 + $0x318] sm:$0xff]
    %v156 = vld [vmem:[%s1 + $0x320] sm:$0xff]
    %v157 = vld [vmem:[%s1 + $0x328] sm:$0xff]
    %v158 = vld [vmem:[%s1 + $0x330] sm:$0xff]
    %v159 = vld [vmem:[%s1 + $0x338] sm:$0xff]
    %v160 = vld [vmem:[%s1 + $0x340] sm:$0xff]
    %v161 = vld [vmem:[%s1 + $0x348] sm:$0xff]
    %v162 = vld [vmem:[%s1 + $0x350] sm:$0xff]
    %v163 = vld [vmem:[%s1 + $0x358] sm:$0xff]
    %v164 = vld [vmem:[%s1 + $0x360] sm:$0xff]
    %v165 = vld [vmem:[%s1 + $0x368] sm:$0xff]
    %v166 = vld [vmem:[%s1 + $0x370] sm:$0xff]
    %v167 = vld [vmem:[%s1 + $0x378] sm:$0xff]
    %v168 = vld [vmem:[%s1 + $0x380] sm:$0xff]
    %v169 = vld [vmem:[%s1 + $0x388] sm:$0xff]
    %v170 = vld [vmem:[%s1 + $0x390] sm:$0xff]
    %v171 = vld [vmem:[%s1 + $0x398] sm:$0xff]
    %v172 = vld [vmem:[%s1 + $0x3a0] sm:$0xff]
    %v173 = vld [vmem:[%s1 + $0x3a8] sm:$0xff]
    %v174 = vld [vmem:[%s1 + $0x3b0] sm:$0xff]
    %v175 = vld [vmem:[%s1 + $0x3b8] sm:$0xff]
    %v176 = vld [vmem:[%s1 + $0x3c0] sm:$0xff]
    %v177 = vld [vmem:[%s1 + $0x3c8] sm:$0xff]
    %v178 = vld [vmem:[%s1 + $0x3d0] sm:$0xff]
    %v179 = vld [vmem:[%s1 + $0x3d8] sm:$0xff]
    %v180 = vld [vmem:[%s1 + $0x3e0] sm:$0xff]
    %v181 = vld [vmem:[%s1 + $0x3e8] sm:$0xff]
    %v182 = vld [vmem:[%s1 + $0x3f0] sm:$0xff]
    %v183 = vld [vmem:[%s1 + $0x3f8] sm:$0xff]
    %v184 = vld [vmem:[%s1 + $0x400] sm:$0xff]
    %v185 = vld [vmem:[%s1 + $0x408] sm:$0xff]
    %v186 = vld [vmem:[%s1 + $0x410] sm:$0xff]
    %v187 = vld [vmem:[%s1 + $0x418] sm:$0xff]
    %v188 = vld [vmem:[%s1 + $0x420] sm:$0xff]
    %v189 = vld [vmem:[%s1 + $0x428] sm:$0xff]
    %v190 = vld [vmem:[%s1 + $0x430] sm:$0xff]
    %v191 = vld [vmem:[%s1 + $0x438] sm:$0xff]
    %v192 = vld [vmem:[%s1 + $0x440] sm:$0xff]
    %v193 = vld [vmem:[%s1 + $0x448] sm:$0xff]
    %v194 = vld [vmem:[%s1 + $0x450] sm:$0xff]
    %v195 = vld [vmem:[%s1 + $0x458] sm:$0xff]
    %v196 = vld [vmem:[%s1 + $0x460] sm:$0xff]
    %v197 = vld [vmem:[%s1 + $0x468] sm:$0xff]
    %v198 = vld [vmem:[%s1 + $0x470] sm:$0xff]
    %v199 = vld [vmem:[%s1 + $0x478] sm:$0xff]
    %v200 = vld [vmem:[%s1 + $0x480] sm:$0xff]
    %v201 = vld [vmem:[%s1 + $0x488] sm:$0xff]
    %v202 = vld [vmem:[%s1 + $0x490] sm:$0xff]
    %v203 = vld [vmem:[%s1 + $0x498] sm:$0xff]
    %v204 = vld [vmem:[%s1 + $0x4a0] sm:$0xff]
    %v205 = vld [vmem:[%s1 + $0x4a8] sm:$0xff]
    %v206 = vld [vmem:[%s1 + $0x4b0] sm:$0xff]
    %v207 = vld [vmem:[%s1 + $0x4b8] sm:$0xff]
    %v208 = vld [vmem:[%s1 + $0x4c0] sm:$0xff]
    %v209 = vld [vmem:[%s1 + $0x4c8] sm:$0xff]
    %v210 = vld [vmem:[%s1 + $0x4d0] sm:$0xff]
    %v211 = vld [vmem:[%s1 + $0x4d8] sm:$0xff]
    %v212 = vld [vmem:[%s1 + $0x4e0] sm:$0xff]
    %v213 = vld [vmem:[%s1 + $0x4e8] sm:$0xff]
    %v214 = vld [vmem:[%s1 + $0x4f0] sm:$0xff]
    %v215 = vld [vmem:[%s1 + $0x4f8] sm:$0xff]
    %v216 = vld [vmem:[%s1 + $0x500] sm:$0xff]
    %v217 = vld [vmem:[%s1 + $0x508] sm:$0xff]
    %v218 = vld [vmem:[%s1 + $0x510] sm:$0xff]
    %v219 = vld [vmem:[%s1 + $0x518] sm:$0xff]
    %v220 = vld [vmem:[%s1 + $0x520] sm:$0xff]
    %v221 = vld [vmem:[%s1 + $0x528] sm:$0xff]
    %v222 = vld [vmem:[%s1 + $0x530] sm:$0xff]
    %v223 = vld [vmem:[%s1 + $0x538] sm:$0xff]
    %v224 = vld [vmem:[%s1 + $0x540] sm:$0xff]
    %v225 = vld [vmem:[%s1 + $0x548] sm:$0xff]
    %v226 = vld [vmem:[%s1 + $0x550] sm:$0xff]
    %v227 = vld [vmem:[%s1 + $0x558] sm:$0xff]
    %v228 = vld [vmem:[%s1 + $0x560] sm:$0xff]
    %v229 = vld [vmem:[%s1 + $0x568] sm:$0xff]
    %v230 = vld [vmem:[%s1 + $0x570] sm:$0xff]
    %v231 = vld [vmem:[%s1 + $0x578] sm:$0xff]
    %v232 = vld [vmem:[%s1 + $0x580] sm:$0xff]
    %v233 = vld [vmem:[%s1 + $0x588] sm:$0xff]
    %v234 = vld [vmem:[%s1 + $0x590] sm:$0xff]
    %v235 = vld [vmem:[%s1 + $0x598] sm:$0xff]
    %v236 = vld [vmem:[%s1 + $0x5a0] sm:$0xff]
    %v237 = vld [vmem:[%s1 + $0x5a8] sm:$0xff]
    %v238 = vld [vmem:[%s1 + $0x5b0] sm:$0xff]
    %v239 = vld [vmem:[%s1 + $0x5b8] sm:$0xff]
    %v240 = vld [vmem:[%s1 + $0x5c0] sm:$0xff]
    %v241 = vld [vmem:[%s1 + $0x5c8] sm:$0xff]
    %v242 = vld [vmem:[%s1 + $0x5d0] sm:$0xff]
    %v243 = vld [vmem:[%s1 + $0x5d8] sm:$0xff]
    %v244 = vld [vmem:[%s1 + $0x5e0] sm:$0xff]
    %v245 = vld [vmem:[%s1 + $0x5e8] sm:$0xff]
    %v246 = vld [vmem:[%s1 + $0x5f0] sm:$0xff]
    %v247 = vld [vmem:[%s1 + $0x5f8] sm:$0xff]
    %v248 = vld [vmem:[%s1 + $0x600] sm:$0xff]
    %v249 = vld [vmem:[%s1 + $0x608] sm:$0xff]
    %v250 = vld [vmem:[%s1 + $0x610] sm:$0xff]
    %v251 = vld [vmem:[%s1 + $0x618] sm:$0xff]
    %v252 = vld [vmem:[%s2] sm:$0xf]
    %v254 = vperm.slane %v252, 0
    %v255 = vperm.slane %v252, 1
    %v256 = vperm.slane %v252, 2
    %v257 = vperm.slane %v252, 3
    %v458 = vunpack.c.l.b16 %v56
    %v459 = vunpack.c.h.b16 %v56
    %v460 = vunpack.c.l.b16 %v57
    %v461 = vunpack.c.h.b16 %v57
    %v462 = vunpack.c.l.b16 %v58
    %v463 = vunpack.c.h.b16 %v58
    %v464 = vunpack.c.l.b16 %v59
    %v465 = vunpack.c.h.b16 %v59
    %v466 = vunpack.c.l.b16 %v60
    %v467 = vunpack.c.h.b16 %v60
    %v468 = vunpack.c.l.b16 %v61
    %v469 = vunpack.c.h.b16 %v61
    %v470 = vunpack.c.l.b16 %v62
    %v471 = vunpack.c.h.b16 %v62
    %v472 = vunpack.c.l.b16 %v63
    %v473 = vunpack.c.h.b16 %v63
    %v474 = vunpack.c.l.b16 %v64
    %v475 = vunpack.c.h.b16 %v64
    %v476 = vunpack.c.l.b16 %v65
    %v477 = vunpack.c.h.b16 %v65
    %v478 = vunpack.c.l.b16 %v66
    %v479 = vunpack.c.h.b16 %v66
    %v480 = vunpack.c.l.b16 %v67
    %v481 = vunpack.c.h.b16 %v67
    %v482 = vunpack.c.l.b16 %v68
    %v483 = vunpack.c.h.b16 %v68
    %v484 = vunpack.c.l.b16 %v69
    %v485 = vunpack.c.h.b16 %v69
    %v486 = vunpack.c.l.b16 %v70
    %v487 = vunpack.c.h.b16 %v70
    %v488 = vunpack.c.l.b16 %v71
    %v489 = vunpack.c.h.b16 %v71
    %v490 = vunpack.c.l.b16 %v72
    %v491 = vunpack.c.h.b16 %v72
    %v492 = vunpack.c.l.b16 %v73
    %v493 = vunpack.c.h.b16 %v73
    %v494 = vunpack.c.l.b16 %v74
    %v495 = vunpack.c.h.b16 %v74
    %v496 = vunpack.c.l.b16 %v75
    %v497 = vunpack.c.h.b16 %v75
    %v498 = vunpack.c.l.b16 %v76
    %v499 = vunpack.c.h.b16 %v76
    %v500 = vunpack.c.l.b16 %v77
    %v501 = vunpack.c.h.b16 %v77
    %v502 = vunpack.c.l.b16 %v78
    %v503 = vunpack.c.h.b16 %v78
    %v504 = vunpack.c.l.b16 %v79
    %v505 = vunpack.c.h.b16 %v79
    %v506 = vunpack.c.l.b16 %v80
    %v507 = vunpack.c.h.b16 %v80
    %v508 = vunpack.c.l.b16 %v81
    %v509 = vunpack.c.h.b16 %v81
    %v510 = vunpack.c.l.b16 %v82
    %v511 = vunpack.c.h.b16 %v82
    %v512 = vunpack.c.l.b16 %v83
    %v513 = vunpack.c.h.b16 %v83
    %v514 = vunpack.c.l.b16 %v84
    %v515 = vunpack.c.h.b16 %v84
    %v516 = vunpack.c.l.b16 %v85
    %v517 = vunpack.c.h.b16 %v85
    %v518 = vunpack.c.l.b16 %v86
    %v519 = vunpack.c.h.b16 %v86
    %v520 = vunpack.c.l.b16 %v87
    %v521 = vunpack.c.h.b16 %v87
    %v522 = vunpack.c.l.b16 %v88
    %v523 = vunpack.c.h.b16 %v88
    %v524 = vunpack.c.l.b16 %v89
    %v525 = vunpack.c.h.b16 %v89
    %v526 = vunpack.c.l.b16 %v90
    %v527 = vunpack.c.h.b16 %v90
    %v528 = vunpack.c.l.b16 %v91
    %v529 = vunpack.c.h.b16 %v91
    %v530 = vunpack.c.l.b16 %v92
    %v531 = vunpack.c.h.b16 %v92
    %v532 = vunpack.c.l.b16 %v93
    %v533 = vunpack.c.h.b16 %v93
    %v534 = vunpack.c.l.b16 %v94
    %v535 = vunpack.c.h.b16 %v94
    %v536 = vunpack.c.l.b16 %v95
    %v537 = vunpack.c.h.b16 %v95
    %v538 = vunpack.c.l.b16 %v96
    %v539 = vunpack.c.h.b16 %v96
    %v540 = vunpack.c.l.b16 %v97
    %v541 = vunpack.c.h.b16 %v97
    %v542 = vunpack.c.l.b16 %v98
    %v543 = vunpack.c.h.b16 %v98
    %v544 = vunpack.c.l.b16 %v99
    %v545 = vunpack.c.h.b16 %v99
    %v546 = vunpack.c.l.b16 %v100
    %v547 = vunpack.c.h.b16 %v100
    %v548 = vunpack.c.l.b16 %v101
    %v549 = vunpack.c.h.b16 %v101
    %v550 = vunpack.c.l.b16 %v102
    %v551 = vunpack.c.h.b16 %v102
    %v552 = vunpack.c.l.b16 %v103
    %v553 = vunpack.c.h.b16 %v103
    %v554 = vunpack.c.l.b16 %v104
    %v555 = vunpack.c.h.b16 %v104
    %v556 = vunpack.c.l.b16 %v105
    %v557 = vunpack.c.h.b16 %v105
    %v558 = vunpack.c.l.b16 %v106
    %v559 = vunpack.c.h.b16 %v106
    %v560 = vunpack.c.l.b16 %v107
    %v561 = vunpack.c.h.b16 %v107
    %v562 = vunpack.c.l.b16 %v108
    %v563 = vunpack.c.h.b16 %v108
    %v564 = vunpack.c.l.b16 %v109
    %v565 = vunpack.c.h.b16 %v109
    %v566 = vunpack.c.l.b16 %v110
    %v567 = vunpack.c.h.b16 %v110
    %v568 = vunpack.c.l.b16 %v111
    %v569 = vunpack.c.h.b16 %v111
    %v570 = vunpack.c.l.b16 %v112
    %v571 = vunpack.c.h.b16 %v112
    %v572 = vunpack.c.l.b16 %v113
    %v573 = vunpack.c.h.b16 %v113
    %v574 = vunpack.c.l.b16 %v114
    %v575 = vunpack.c.h.b16 %v114
    %v576 = vunpack.c.l.b16 %v115
    %v577 = vunpack.c.h.b16 %v115
    %v578 = vunpack.c.l.b16 %v116
    %v579 = vunpack.c.h.b16 %v116
    %v580 = vunpack.c.l.b16 %v117
    %v581 = vunpack.c.h.b16 %v117
    %v582 = vunpack.c.l.b16 %v118
    %v583 = vunpack.c.h.b16 %v118
    %v584 = vunpack.c.l.b16 %v119
    %v585 = vunpack.c.h.b16 %v119
    %v586 = vunpack.c.l.b16 %v120
    %v587 = vunpack.c.h.b16 %v120
    %v588 = vunpack.c.l.b16 %v121
    %v589 = vunpack.c.h.b16 %v121
    %v590 = vunpack.c.l.b16 %v122
    %v591 = vunpack.c.h.b16 %v122
    %v592 = vunpack.c.l.b16 %v123
    %v593 = vunpack.c.h.b16 %v123
    %v594 = vunpack.c.l.b16 %v124
    %v595 = vunpack.c.h.b16 %v124
    %v596 = vunpack.c.l.b16 %v125
    %v597 = vunpack.c.h.b16 %v125
    %v598 = vunpack.c.l.b16 %v126
    %v599 = vunpack.c.h.b16 %v126
    %v600 = vunpack.c.l.b16 %v127
    %v601 = vunpack.c.h.b16 %v127
    %v602 = vunpack.c.l.b16 %v128
    %v603 = vunpack.c.h.b16 %v128
    %v604 = vunpack.c.l.b16 %v129
    %v605 = vunpack.c.h.b16 %v129
    %v606 = vunpack.c.l.b16 %v130
    %v607 = vunpack.c.h.b16 %v130
    %v608 = vunpack.c.l.b16 %v131
    %v609 = vunpack.c.h.b16 %v131
    %v610 = vunpack.c.l.b16 %v132
    %v611 = vunpack.c.h.b16 %v132
    %v612 = vunpack.c.l.b16 %v133
    %v613 = vunpack.c.h.b16 %v133
    %v614 = vunpack.c.l.b16 %v134
    %v615 = vunpack.c.h.b16 %v134
    %v616 = vunpack.c.l.b16 %v135
    %v617 = vunpack.c.h.b16 %v135
    %v618 = vunpack.c.l.b16 %v136
    %v619 = vunpack.c.h.b16 %v136
    %v620 = vunpack.c.l.b16 %v137
    %v621 = vunpack.c.h.b16 %v137
    %v622 = vunpack.c.l.b16 %v138
    %v623 = vunpack.c.h.b16 %v138
    %v624 = vunpack.c.l.b16 %v139
    %v625 = vunpack.c.h.b16 %v139
    %v626 = vunpack.c.l.b16 %v140
    %v627 = vunpack.c.h.b16 %v140
    %v628 = vunpack.c.l.b16 %v141
    %v629 = vunpack.c.h.b16 %v141
    %v630 = vunpack.c.l.b16 %v142
    %v631 = vunpack.c.h.b16 %v142
    %v632 = vunpack.c.l.b16 %v143
    %v633 = vunpack.c.h.b16 %v143
    %v634 = vunpack.c.l.b16 %v144
    %v635 = vunpack.c.h.b16 %v144
    %v636 = vunpack.c.l.b16 %v145
    %v637 = vunpack.c.h.b16 %v145
    %v638 = vunpack.c.l.b16 %v146
    %v639 = vunpack.c.h.b16 %v146
    %v640 = vunpack.c.l.b16 %v147
    %v641 = vunpack.c.h.b16 %v147
    %v642 = vunpack.c.l.b16 %v148
    %v643 = vunpack.c.h.b16 %v148
    %v644 = vunpack.c.l.b16 %v149
    %v645 = vunpack.c.h.b16 %v149
    %v646 = vunpack.c.l.b16 %v150
    %v647 = vunpack.c.h.b16 %v150
    %v648 = vunpack.c.l.b16 %v151
    %v649 = vunpack.c.h.b16 %v151
    %v650 = vunpack.c.l.b16 %v152
    %v651 = vunpack.c.h.b16 %v152
    %v652 = vunpack.c.l.b16 %v153
    %v653 = vunpack.c.h.b16 %v153
    %v654 = vunpack.c.l.b16 %v154
    %v655 = vunpack.c.h.b16 %v154
    %v656 = vunpack.c.l.b16 %v155
    %v657 = vunpack.c.h.b16 %v155
    %v658 = vunpack.c.l.b16 %v156
    %v659 = vunpack.c.h.b16 %v156
    %v660 = vunpack.c.l.b16 %v157
    %v661 = vunpack.c.h.b16 %v157
    %v662 = vunpack.c.l.b16 %v158
    %v663 = vunpack.c.h.b16 %v158
    %v664 = vunpack.c.l.b16 %v159
    %v665 = vunpack.c.h.b16 %v159
    %v666 = vunpack.c.l.b16 %v160
    %v667 = vunpack.c.h.b16 %v160
    %v668 = vunpack.c.l.b16 %v161
    %v669 = vunpack.c.h.b16 %v161
    %v670 = vunpack.c.l.b16 %v162
    %v671 = vunpack.c.h.b16 %v162
    %v672 = vunpack.c.l.b16 %v163
    %v673 = vunpack.c.h.b16 %v163
    %v674 = vunpack.c.l.b16 %v164
    %v675 = vunpack.c.h.b16 %v164
    %v676 = vunpack.c.l.b16 %v165
    %v677 = vunpack.c.h.b16 %v165
    %v678 = vunpack.c.l.b16 %v166
    %v679 = vunpack.c.h.b16 %v166
    %v680 = vunpack.c.l.b16 %v167
    %v681 = vunpack.c.h.b16 %v167
    %v682 = vunpack.c.l.b16 %v168
    %v683 = vunpack.c.h.b16 %v168
    %v684 = vunpack.c.l.b16 %v169
    %v685 = vunpack.c.h.b16 %v169
    %v686 = vunpack.c.l.b16 %v170
    %v687 = vunpack.c.h.b16 %v170
    %v688 = vunpack.c.l.b16 %v171
    %v689 = vunpack.c.h.b16 %v171
    %v690 = vunpack.c.l.b16 %v172
    %v691 = vunpack.c.h.b16 %v172
    %v692 = vunpack.c.l.b16 %v173
    %v693 = vunpack.c.h.b16 %v173
    %v694 = vunpack.c.l.b16 %v174
    %v695 = vunpack.c.h.b16 %v174
    %v696 = vunpack.c.l.b16 %v175
    %v697 = vunpack.c.h.b16 %v175
    %v698 = vunpack.c.l.b16 %v176
    %v699 = vunpack.c.h.b16 %v176
    %v700 = vunpack.c.l.b16 %v177
    %v701 = vunpack.c.h.b16 %v177
    %v702 = vunpack.c.l.b16 %v178
    %v703 = vunpack.c.h.b16 %v178
    %v704 = vunpack.c.l.b16 %v179
    %v705 = vunpack.c.h.b16 %v179
    %v706 = vunpack.c.l.b16 %v180
    %v707 = vunpack.c.h.b16 %v180
    %v708 = vunpack.c.l.b16 %v181
    %v709 = vunpack.c.h.b16 %v181
    %v710 = vunpack.c.l.b16 %v182
    %v711 = vunpack.c.h.b16 %v182
    %v712 = vunpack.c.l.b16 %v183
    %v713 = vunpack.c.h.b16 %v183
    %v714 = vunpack.c.l.b16 %v184
    %v715 = vunpack.c.h.b16 %v184
    %v716 = vunpack.c.l.b16 %v185
    %v717 = vunpack.c.h.b16 %v185
    %v718 = vunpack.c.l.b16 %v186
    %v719 = vunpack.c.h.b16 %v186
    %v720 = vunpack.c.l.b16 %v187
    %v721 = vunpack.c.h.b16 %v187
    %v722 = vunpack.c.l.b16 %v188
    %v723 = vunpack.c.h.b16 %v188
    %v724 = vunpack.c.l.b16 %v189
    %v725 = vunpack.c.h.b16 %v189
    %v726 = vunpack.c.l.b16 %v190
    %v727 = vunpack.c.h.b16 %v190
    %v728 = vunpack.c.l.b16 %v191
    %v729 = vunpack.c.h.b16 %v191
    %v730 = vunpack.c.l.b16 %v192
    %v731 = vunpack.c.h.b16 %v192
    %v732 = vunpack.c.l.b16 %v193
    %v733 = vunpack.c.h.b16 %v193
    %v734 = vunpack.c.l.b16 %v194
    %v735 = vunpack.c.h.b16 %v194
    %v736 = vunpack.c.l.b16 %v195
    %v737 = vunpack.c.h.b16 %v195
    %v738 = vunpack.c.l.b16 %v196
    %v739 = vunpack.c.h.b16 %v196
    %v740 = vunpack.c.l.b16 %v197
    %v741 = vunpack.c.h.b16 %v197
    %v742 = vunpack.c.l.b16 %v198
    %v743 = vunpack.c.h.b16 %v198
    %v744 = vunpack.c.l.b16 %v199
    %v745 = vunpack.c.h.b16 %v199
    %v746 = vunpack.c.l.b16 %v200
    %v747 = vunpack.c.h.b16 %v200
    %v748 = vunpack.c.l.b16 %v201
    %v749 = vunpack.c.h.b16 %v201
    %v750 = vunpack.c.l.b16 %v202
    %v751 = vunpack.c.h.b16 %v202
    %v752 = vunpack.c.l.b16 %v203
    %v753 = vunpack.c.h.b16 %v203
    %v754 = vunpack.c.l.b16 %v204
    %v755 = vunpack.c.h.b16 %v204
    %v756 = vunpack.c.l.b16 %v205
    %v757 = vunpack.c.h.b16 %v205
    %v758 = vunpack.c.l.b16 %v206
    %v759 = vunpack.c.h.b16 %v206
    %v760 = vunpack.c.l.b16 %v207
    %v761 = vunpack.c.h.b16 %v207
    %v762 = vunpack.c.l.b16 %v208
    %v763 = vunpack.c.h.b16 %v208
    %v764 = vunpack.c.l.b16 %v209
    %v765 = vunpack.c.h.b16 %v209
    %v766 = vunpack.c.l.b16 %v210
    %v767 = vunpack.c.h.b16 %v210
    %v768 = vunpack.c.l.b16 %v211
    %v769 = vunpack.c.h.b16 %v211
    %v770 = vunpack.c.l.b16 %v212
    %v771 = vunpack.c.h.b16 %v212
    %v772 = vunpack.c.l.b16 %v213
    %v773 = vunpack.c.h.b16 %v213
    %v774 = vunpack.c.l.b16 %v214
    %v775 = vunpack.c.h.b16 %v214
    %v776 = vunpack.c.l.b16 %v215
    %v777 = vunpack.c.h.b16 %v215
    %v778 = vunpack.c.l.b16 %v216
    %v779 = vunpack.c.h.b16 %v216
    %v780 = vunpack.c.l.b16 %v217
    %v781 = vunpack.c.h.b16 %v217
    %v782 = vunpack.c.l.b16 %v218
    %v783 = vunpack.c.h.b16 %v218
    %v784 = vunpack.c.l.b16 %v219
    %v785 = vunpack.c.h.b16 %v219
    %v786 = vunpack.c.l.b16 %v220
    %v787 = vunpack.c.h.b16 %v220
    %v788 = vunpack.c.l.b16 %v221
    %v789 = vunpack.c.h.b16 %v221
    %v790 = vunpack.c.l.b16 %v222
    %v791 = vunpack.c.h.b16 %v222
    %v792 = vunpack.c.l.b16 %v223
    %v793 = vunpack.c.h.b16 %v223
    %v794 = vunpack.c.l.b16 %v224
    %v795 = vunpack.c.h.b16 %v224
    %v796 = vunpack.c.l.b16 %v225
    %v797 = vunpack.c.h.b16 %v225
    %v798 = vunpack.c.l.b16 %v226
    %v799 = vunpack.c.h.b16 %v226
    %v800 = vunpack.c.l.b16 %v227
    %v801 = vunpack.c.h.b16 %v227
    %v802 = vunpack.c.l.b16 %v228
    %v803 = vunpack.c.h.b16 %v228
    %v804 = vunpack.c.l.b16 %v229
    %v805 = vunpack.c.h.b16 %v229
    %v806 = vunpack.c.l.b16 %v230
    %v807 = vunpack.c.h.b16 %v230
    %v808 = vunpack.c.l.b16 %v231
    %v809 = vunpack.c.h.b16 %v231
    %v810 = vunpack.c.l.b16 %v232
    %v811 = vunpack.c.h.b16 %v232
    %v812 = vunpack.c.l.b16 %v233
    %v813 = vunpack.c.h.b16 %v233
    %v814 = vunpack.c.l.b16 %v234
    %v815 = vunpack.c.h.b16 %v234
    %v816 = vunpack.c.l.b16 %v235
    %v817 = vunpack.c.h.b16 %v235
    %v818 = vunpack.c.l.b16 %v236
    %v819 = vunpack.c.h.b16 %v236
    %v820 = vunpack.c.l.b16 %v237
    %v821 = vunpack.c.h.b16 %v237
    %v822 = vunpack.c.l.b16 %v238
    %v823 = vunpack.c.h.b16 %v238
    %v824 = vunpack.c.l.b16 %v239
    %v825 = vunpack.c.h.b16 %v239
    %v826 = vunpack.c.l.b16 %v240
    %v827 = vunpack.c.h.b16 %v240
    %v828 = vunpack.c.l.b16 %v241
    %v829 = vunpack.c.h.b16 %v241
    %v830 = vunpack.c.l.b16 %v242
    %v831 = vunpack.c.h.b16 %v242
    %v832 = vunpack.c.l.b16 %v243
    %v833 = vunpack.c.h.b16 %v243
    %v834 = vunpack.c.l.b16 %v244
    %v835 = vunpack.c.h.b16 %v244
    %v836 = vunpack.c.l.b16 %v245
    %v837 = vunpack.c.h.b16 %v245
    %v838 = vunpack.c.l.b16 %v246
    %v839 = vunpack.c.h.b16 %v246
    %v840 = vunpack.c.l.b16 %v247
    %v841 = vunpack.c.h.b16 %v247
    %v842 = vunpack.c.l.b16 %v248
    %v843 = vunpack.c.h.b16 %v248
    %v844 = vunpack.c.l.b16 %v249
    %v845 = vunpack.c.h.b16 %v249
    %v846 = vunpack.c.l.b16 %v250
    %v847 = vunpack.c.h.b16 %v250
    %v848 = vunpack.c.l.b16 %v251
    %v849 = vunpack.c.h.b16 %v251
    %v850 = vpack.c.b16 %v462, %v458
    %v851 = vpack.c.b16 %v463, %v459
    %v852 = vpack.c.b16 %v464, %v460
    %v853 = vpack.c.b16 %v465, %v461
    %v854 = vpack.c.b16 %v470, %v466
    %v855 = vpack.c.b16 %v471, %v467
    %v856 = vpack.c.b16 %v472, %v468
    %v857 = vpack.c.b16 %v473, %v469
    %v858 = vpack.c.b16 %v478, %v474
    %v859 = vpack.c.b16 %v479, %v475
    %v860 = vpack.c.b16 %v480, %v476
    %v861 = vpack.c.b16 %v481, %v477
    %v862 = vpack.c.b16 %v486, %v482
    %v863 = vpack.c.b16 %v487, %v483
    %v864 = vpack.c.b16 %v488, %v484
    %v865 = vpack.c.b16 %v489, %v485
    %v866 = vpack.c.b16 %v494, %v490
    %v867 = vpack.c.b16 %v495, %v491
    %v868 = vpack.c.b16 %v496, %v492
    %v869 = vpack.c.b16 %v497, %v493
    %v870 = vpack.c.b16 %v502, %v498
    %v871 = vpack.c.b16 %v503, %v499
    %v872 = vpack.c.b16 %v504, %v500
    %v873 = vpack.c.b16 %v505, %v501
    %v874 = vpack.c.b16 %v510, %v506
    %v875 = vpack.c.b16 %v511, %v507
    %v876 = vpack.c.b16 %v512, %v508
    %v877 = vpack.c.b16 %v513, %v509
    %v878 = vpack.c.b16 %v518, %v514
    %v879 = vpack.c.b16 %v519, %v515
    %v880 = vpack.c.b16 %v520, %v516
    %v881 = vpack.c.b16 %v521, %v517
    %v882 = vpack.c.b16 %v526, %v522
    %v883 = vpack.c.b16 %v527, %v523
    %v884 = vpack.c.b16 %v528, %v524
    %v885 = vpack.c.b16 %v529, %v525
    %v886 = vpack.c.b16 %v534, %v530
    %v887 = vpack.c.b16 %v535, %v531
    %v888 = vpack.c.b16 %v536, %v532
    %v889 = vpack.c.b16 %v537, %v533
    %v890 = vpack.c.b16 %v542, %v538
    %v891 = vpack.c.b16 %v543, %v539
    %v892 = vpack.c.b16 %v544, %v540
    %v893 = vpack.c.b16 %v545, %v541
    %v894 = vpack.c.b16 %v550, %v546
    %v895 = vpack.c.b16 %v551, %v547
    %v896 = vpack.c.b16 %v552, %v548
    %v897 = vpack.c.b16 %v553, %v549
    %v898 = vpack.c.b16 %v558, %v554
    %v899 = vpack.c.b16 %v559, %v555
    %v900 = vpack.c.b16 %v560, %v556
    %v901 = vpack.c.b16 %v561, %v557
    %v902 = vpack.c.b16 %v566, %v562
    %v903 = vpack.c.b16 %v567, %v563
    %v904 = vpack.c.b16 %v568, %v564
    %v905 = vpack.c.b16 %v569, %v565
    %v906 = vpack.c.b16 %v574, %v570
    %v907 = vpack.c.b16 %v575, %v571
    %v908 = vpack.c.b16 %v576, %v572
    %v909 = vpack.c.b16 %v577, %v573
    %v910 = vpack.c.b16 %v582, %v578
    %v911 = vpack.c.b16 %v583, %v579
    %v912 = vpack.c.b16 %v584, %v580
    %v913 = vpack.c.b16 %v585, %v581
    %v914 = vpack.c.b16 %v590, %v586
    %v915 = vpack.c.b16 %v591, %v587
    %v916 = vpack.c.b16 %v592, %v588
    %v917 = vpack.c.b16 %v593, %v589
    %v918 = vpack.c.b16 %v598, %v594
    %v919 = vpack.c.b16 %v599, %v595
    %v920 = vpack.c.b16 %v600, %v596
    %v921 = vpack.c.b16 %v601, %v597
    %v922 = vpack.c.b16 %v606, %v602
    %v923 = vpack.c.b16 %v607, %v603
    %v924 = vpack.c.b16 %v608, %v604
    %v925 = vpack.c.b16 %v609, %v605
    %v926 = vpack.c.b16 %v614, %v610
    %v927 = vpack.c.b16 %v615, %v611
    %v928 = vpack.c.b16 %v616, %v612
    %v929 = vpack.c.b16 %v617, %v613
    %v930 = vpack.c.b16 %v622, %v618
    %v931 = vpack.c.b16 %v623, %v619
    %v932 = vpack.c.b16 %v624, %v620
    %v933 = vpack.c.b16 %v625, %v621
    %v934 = vpack.c.b16 %v630, %v626
    %v935 = vpack.c.b16 %v631, %v627
    %v936 = vpack.c.b16 %v632, %v628
    %v937 = vpack.c.b16 %v633, %v629
    %v938 = vpack.c.b16 %v638, %v634
    %v939 = vpack.c.b16 %v639, %v635
    %v940 = vpack.c.b16 %v640, %v636
    %v941 = vpack.c.b16 %v641, %v637
    %v942 = vpack.c.b16 %v646, %v642
    %v943 = vpack.c.b16 %v647, %v643
    %v944 = vpack.c.b16 %v648, %v644
    %v945 = vpack.c.b16 %v649, %v645
    %v946 = vpack.c.b16 %v654, %v650
    %v947 = vpack.c.b16 %v655, %v651
    %v948 = vpack.c.b16 %v656, %v652
    %v949 = vpack.c.b16 %v657, %v653
    %v950 = vpack.c.b16 %v662, %v658
    %v951 = vpack.c.b16 %v663, %v659
    %v952 = vpack.c.b16 %v664, %v660
    %v953 = vpack.c.b16 %v665, %v661
    %v954 = vpack.c.b16 %v670, %v666
    %v955 = vpack.c.b16 %v671, %v667
    %v956 = vpack.c.b16 %v672, %v668
    %v957 = vpack.c.b16 %v673, %v669
    %v958 = vpack.c.b16 %v678, %v674
    %v959 = vpack.c.b16 %v679, %v675
    %v960 = vpack.c.b16 %v680, %v676
    %v961 = vpack.c.b16 %v681, %v677
    %v962 = vpack.c.b16 %v686, %v682
    %v963 = vpack.c.b16 %v687, %v683
    %v964 = vpack.c.b16 %v688, %v684
    %v965 = vpack.c.b16 %v689, %v685
    %v966 = vpack.c.b16 %v694, %v690
    %v967 = vpack.c.b16 %v695, %v691
    %v968 = vpack.c.b16 %v696, %v692
    %v969 = vpack.c.b16 %v697, %v693
    %v970 = vpack.c.b16 %v702, %v698
    %v971 = vpack.c.b16 %v703, %v699
    %v972 = vpack.c.b16 %v704, %v700
    %v973 = vpack.c.b16 %v705, %v701
    %v974 = vpack.c.b16 %v710, %v706
    %v975 = vpack.c.b16 %v711, %v707
    %v976 = vpack.c.b16 %v712, %v708
    %v977 = vpack.c.b16 %v713, %v709
    %v978 = vpack.c.b16 %v718, %v714
    %v979 = vpack.c.b16 %v719, %v715
    %v980 = vpack.c.b16 %v720, %v716
    %v981 = vpack.c.b16 %v721, %v717
    %v982 = vpack.c.b16 %v726, %v722
    %v983 = vpack.c.b16 %v727, %v723
    %v984 = vpack.c.b16 %v728, %v724
    %v985 = vpack.c.b16 %v729, %v725
    %v986 = vpack.c.b16 %v734, %v730
    %v987 = vpack.c.b16 %v735, %v731
    %v988 = vpack.c.b16 %v736, %v732
    %v989 = vpack.c.b16 %v737, %v733
    %v990 = vpack.c.b16 %v742, %v738
    %v991 = vpack.c.b16 %v743, %v739
    %v992 = vpack.c.b16 %v744, %v740
    %v993 = vpack.c.b16 %v745, %v741
    %v994 = vpack.c.b16 %v750, %v746
    %v995 = vpack.c.b16 %v751, %v747
    %v996 = vpack.c.b16 %v752, %v748
    %v997 = vpack.c.b16 %v753, %v749
    %v998 = vpack.c.b16 %v758, %v754
    %v999 = vpack.c.b16 %v759, %v755
    %v1000 = vpack.c.b16 %v760, %v756
    %v1001 = vpack.c.b16 %v761, %v757
    %v1002 = vpack.c.b16 %v766, %v762
    %v1003 = vpack.c.b16 %v767, %v763
    %v1004 = vpack.c.b16 %v768, %v764
    %v1005 = vpack.c.b16 %v769, %v765
    %v1006 = vpack.c.b16 %v774, %v770
    %v1007 = vpack.c.b16 %v775, %v771
    %v1008 = vpack.c.b16 %v776, %v772
    %v1009 = vpack.c.b16 %v777, %v773
    %v1010 = vpack.c.b16 %v782, %v778
    %v1011 = vpack.c.b16 %v783, %v779
    %v1012 = vpack.c.b16 %v784, %v780
    %v1013 = vpack.c.b16 %v785, %v781
    %v1014 = vpack.c.b16 %v790, %v786
    %v1015 = vpack.c.b16 %v791, %v787
    %v1016 = vpack.c.b16 %v792, %v788
    %v1017 = vpack.c.b16 %v793, %v789
    %v1018 = vpack.c.b16 %v798, %v794
    %v1019 = vpack.c.b16 %v799, %v795
    %v1020 = vpack.c.b16 %v800, %v796
    %v1021 = vpack.c.b16 %v801, %v797
    %v1022 = vpack.c.b16 %v806, %v802
    %v1023 = vpack.c.b16 %v807, %v803
    %v1024 = vpack.c.b16 %v808, %v804
    %v1025 = vpack.c.b16 %v809, %v805
    %v1026 = vpack.c.b16 %v814, %v810
    %v1027 = vpack.c.b16 %v815, %v811
    %v1028 = vpack.c.b16 %v816, %v812
    %v1029 = vpack.c.b16 %v817, %v813
    %v1030 = vpack.c.b16 %v822, %v818
    %v1031 = vpack.c.b16 %v823, %v819
    %v1032 = vpack.c.b16 %v824, %v820
    %v1033 = vpack.c.b16 %v825, %v821
    %v1034 = vpack.c.b16 %v830, %v826
    %v1035 = vpack.c.b16 %v831, %v827
    %v1036 = vpack.c.b16 %v832, %v828
    %v1037 = vpack.c.b16 %v833, %v829
    %v1038 = vpack.c.b16 %v838, %v834
    %v1039 = vpack.c.b16 %v839, %v835
    %v1040 = vpack.c.b16 %v840, %v836
    %v1041 = vpack.c.b16 %v841, %v837
    %v1042 = vpack.c.b16 %v846, %v842
    %v1043 = vpack.c.b16 %v847, %v843
    %v1044 = vpack.c.b16 %v848, %v844
    %v1045 = vpack.c.b16 %v849, %v845
    %vm1242 = vcmask 130048
    %v1244 = vsel %vm1242, %v55, 0
    %1246 = vmatpush.bf16.msra.mxu0 %v878
    %1247 = vmatpush.bf16.msra.mxu0 %v874
    %1248 = vmatpush.bf16.msra.mxu0 %v870
    %1249 = vmatpush.bf16.msra.mxu0 %v866
    %1250 = vmatpush.bf16.msra.mxu0 %v862
    %1251 = vmatpush.bf16.msra.mxu0 %v858
    %1252 = vmatpush.bf16.msra.mxu0 %v854
    %1253 = vmatpush.bf16.msra.mxu0 %v850
    %1254 = vmatmul.bf16.gmra.mxu0 %v49
    %v1255 = vpop.f32.mrf.mxu0
    %v1256 = vadd.f32 %v254, %v1255
    %v1257 = vpop.f32.mrf.mxu0
    %1258 = vdwg.mxu0
    %1259 = vmatpush.bf16.msra.mxu0 %v910
    %1260 = vmatpush.bf16.msra.mxu0 %v906
    %1261 = vmatpush.bf16.msra.mxu0 %v902
    %1262 = vmatpush.bf16.msra.mxu0 %v898
    %1263 = vmatpush.bf16.msra.mxu0 %v894
    %1264 = vmatpush.bf16.msra.mxu0 %v890
    %1265 = vmatpush.bf16.msra.mxu0 %v886
    %1266 = vmatpush.bf16.msra.mxu0 %v882
    %1267 = vmatmul.bf16.gmra.mxu0 %v50
    %v1268 = vpop.f32.mrf.mxu0
    %v1269 = vadd.f32 %v1256, %v1268
    %v1270 = vpop.f32.mrf.mxu0
    %1271 = vdwg.mxu0
    %1272 = vmatpush.bf16.msra.mxu0 %v942
    %1273 = vmatpush.bf16.msra.mxu0 %v938
    %1274 = vmatpush.bf16.msra.mxu0 %v934
    %1275 = vmatpush.bf16.msra.mxu0 %v930
    %1276 = vmatpush.bf16.msra.mxu0 %v926
    %1277 = vmatpush.bf16.msra.mxu0 %v922
    %1278 = vmatpush.bf16.msra.mxu0 %v918
    %1279 = vmatpush.bf16.msra.mxu0 %v914
    %1280 = vmatmul.bf16.gmra.mxu0 %v51
    %v1281 = vpop.f32.mrf.mxu0
    %v1282 = vadd.f32 %v1269, %v1281
    %v1283 = vpop.f32.mrf.mxu0
    %1284 = vdwg.mxu0
    %1285 = vmatpush.bf16.msra.mxu0 %v974
    %1286 = vmatpush.bf16.msra.mxu0 %v970
    %1287 = vmatpush.bf16.msra.mxu0 %v966
    %1288 = vmatpush.bf16.msra.mxu0 %v962
    %1289 = vmatpush.bf16.msra.mxu0 %v958
    %1290 = vmatpush.bf16.msra.mxu0 %v954
    %1291 = vmatpush.bf16.msra.mxu0 %v950
    %1292 = vmatpush.bf16.msra.mxu0 %v946
    %1293 = vmatmul.bf16.gmra.mxu0 %v52
    %v1294 = vpop.f32.mrf.mxu0
    %v1295 = vadd.f32 %v1282, %v1294
    %v1296 = vpop.f32.mrf.mxu0
    %1297 = vdwg.mxu0
    %1298 = vmatpush.bf16.msra.mxu0 %v1006
    %1299 = vmatpush.bf16.msra.mxu0 %v1002
    %1300 = vmatpush.bf16.msra.mxu0 %v998
    %1301 = vmatpush.bf16.msra.mxu0 %v994
    %1302 = vmatpush.bf16.msra.mxu0 %v990
    %1303 = vmatpush.bf16.msra.mxu0 %v986
    %1304 = vmatpush.bf16.msra.mxu0 %v982
    %1305 = vmatpush.bf16.msra.mxu0 %v978
    %1306 = vmatmul.bf16.gmra.mxu0 %v53
    %v1307 = vpop.f32.mrf.mxu0
    %v1308 = vadd.f32 %v1295, %v1307
    %v1309 = vpop.f32.mrf.mxu0
    %1310 = vdwg.mxu0
    %1311 = vmatpush.bf16.msra.mxu0 %v1038
    %1312 = vmatpush.bf16.msra.mxu0 %v1034
    %1313 = vmatpush.bf16.msra.mxu0 %v1030
    %1314 = vmatpush.bf16.msra.mxu0 %v1026
    %1315 = vmatpush.bf16.msra.mxu0 %v1022
    %1316 = vmatpush.bf16.msra.mxu0 %v1018
    %1317 = vmatpush.bf16.msra.mxu0 %v1014
    %1318 = vmatpush.bf16.msra.mxu0 %v1010
    %1319 = vmatmul.bf16.gmra.mxu0 %v54
    %v1320 = vpop.f32.mrf.mxu0
    %v1321 = vadd.f32 %v1308, %v1320
    %v1322 = vpop.f32.mrf.mxu0
    %1323 = vdwg.mxu0
    %1324 = vmatpush.bf16.msra.mxu0 0
    %1325 = vmatpush.bf16.msra.mxu0 0
    %1326 = vmatpush.bf16.msra.mxu0 0
    %1327 = vmatpush.bf16.msra.mxu0 0
    %1328 = vmatpush.bf16.msra.mxu0 0
    %1329 = vmatpush.bf16.msra.mxu0 0
    %1330 = vmatpush.bf16.msra.mxu0 0
    %1331 = vmatpush.bf16.msra.mxu0 %v1042
    %1332 = vmatmul.bf16.gmra.mxu0 %v1244
    %v1333 = vpop.f32.mrf.mxu0
    %v1334 = vadd.f32 %v1321, %v1333
    %v1335 = vpop.f32.mrf.mxu0
    %1336 = vdwg.mxu0
    %1337 = vmatpush.bf16.msra.mxu0 %v879
    %1338 = vmatpush.bf16.msra.mxu0 %v875
    %1339 = vmatpush.bf16.msra.mxu0 %v871
    %1340 = vmatpush.bf16.msra.mxu0 %v867
    %1341 = vmatpush.bf16.msra.mxu0 %v863
    %1342 = vmatpush.bf16.msra.mxu0 %v859
    %1343 = vmatpush.bf16.msra.mxu0 %v855
    %1344 = vmatpush.bf16.msra.mxu0 %v851
    %1345 = vmatmul.bf16.gmra.mxu0 %v49
    %v1346 = vpop.f32.mrf.mxu0
    %v1347 = vadd.f32 %v255, %v1346
    %v1348 = vpop.f32.mrf.mxu0
    %1349 = vdwg.mxu0
    %1350 = vmatpush.bf16.msra.mxu0 %v911
    %1351 = vmatpush.bf16.msra.mxu0 %v907
    %1352 = vmatpush.bf16.msra.mxu0 %v903
    %1353 = vmatpush.bf16.msra.mxu0 %v899
    %1354 = vmatpush.bf16.msra.mxu0 %v895
    %1355 = vmatpush.bf16.msra.mxu0 %v891
    %1356 = vmatpush.bf16.msra.mxu0 %v887
    %1357 = vmatpush.bf16.msra.mxu0 %v883
    %1358 = vmatmul.bf16.gmra.mxu0 %v50
    %v1359 = vpop.f32.mrf.mxu0
    %v1360 = vadd.f32 %v1347, %v1359
    %v1361 = vpop.f32.mrf.mxu0
    %1362 = vdwg.mxu0
    %1363 = vmatpush.bf16.msra.mxu0 %v943
    %1364 = vmatpush.bf16.msra.mxu0 %v939
    %1365 = vmatpush.bf16.msra.mxu0 %v935
    %1366 = vmatpush.bf16.msra.mxu0 %v931
    %1367 = vmatpush.bf16.msra.mxu0 %v927
    %1368 = vmatpush.bf16.msra.mxu0 %v923
    %1369 = vmatpush.bf16.msra.mxu0 %v919
    %1370 = vmatpush.bf16.msra.mxu0 %v915
    %1371 = vmatmul.bf16.gmra.mxu0 %v51
    %v1372 = vpop.f32.mrf.mxu0
    %v1373 = vadd.f32 %v1360, %v1372
    %v1374 = vpop.f32.mrf.mxu0
    %1375 = vdwg.mxu0
    %1376 = vmatpush.bf16.msra.mxu0 %v975
    %1377 = vmatpush.bf16.msra.mxu0 %v971
    %1378 = vmatpush.bf16.msra.mxu0 %v967
    %1379 = vmatpush.bf16.msra.mxu0 %v963
    %1380 = vmatpush.bf16.msra.mxu0 %v959
    %1381 = vmatpush.bf16.msra.mxu0 %v955
    %1382 = vmatpush.bf16.msra.mxu0 %v951
    %1383 = vmatpush.bf16.msra.mxu0 %v947
    %1384 = vmatmul.bf16.gmra.mxu0 %v52
    %v1385 = vpop.f32.mrf.mxu0
    %v1386 = vadd.f32 %v1373, %v1385
    %v1387 = vpop.f32.mrf.mxu0
    %1388 = vdwg.mxu0
    %1389 = vmatpush.bf16.msra.mxu0 %v1007
    %1390 = vmatpush.bf16.msra.mxu0 %v1003
    %1391 = vmatpush.bf16.msra.mxu0 %v999
    %1392 = vmatpush.bf16.msra.mxu0 %v995
    %1393 = vmatpush.bf16.msra.mxu0 %v991
    %1394 = vmatpush.bf16.msra.mxu0 %v987
    %1395 = vmatpush.bf16.msra.mxu0 %v983
    %1396 = vmatpush.bf16.msra.mxu0 %v979
    %1397 = vmatmul.bf16.gmra.mxu0 %v53
    %v1398 = vpop.f32.mrf.mxu0
    %v1399 = vadd.f32 %v1386, %v1398
    %v1400 = vpop.f32.mrf.mxu0
    %1401 = vdwg.mxu0
    %1402 = vmatpush.bf16.msra.mxu0 %v1039
    %1403 = vmatpush.bf16.msra.mxu0 %v1035
    %1404 = vmatpush.bf16.msra.mxu0 %v1031
    %1405 = vmatpush.bf16.msra.mxu0 %v1027
    %1406 = vmatpush.bf16.msra.mxu0 %v1023
    %1407 = vmatpush.bf16.msra.mxu0 %v1019
    %1408 = vmatpush.bf16.msra.mxu0 %v1015
    %1409 = vmatpush.bf16.msra.mxu0 %v1011
    %1410 = vmatmul.bf16.gmra.mxu0 %v54
    %v1411 = vpop.f32.mrf.mxu0
    %v1412 = vadd.f32 %v1399, %v1411
    %v1413 = vpop.f32.mrf.mxu0
    %1414 = vdwg.mxu0
    %1415 = vmatpush.bf16.msra.mxu0 0
    %1416 = vmatpush.bf16.msra.mxu0 0
    %1417 = vmatpush.bf16.msra.mxu0 0
    %1418 = vmatpush.bf16.msra.mxu0 0
    %1419 = vmatpush.bf16.msra.mxu0 0
    %1420 = vmatpush.bf16.msra.mxu0 0
    %1421 = vmatpush.bf16.msra.mxu0 0
    %1422 = vmatpush.bf16.msra.mxu0 %v1043
    %1423 = vmatmul.bf16.gmra.mxu0 %v1244
    %v1424 = vpop.f32.mrf.mxu0
    %v1425 = vadd.f32 %v1412, %v1424
    %v1426 = vpop.f32.mrf.mxu0
    %1427 = vdwg.mxu0
    %1428 = vmatpush.bf16.msra.mxu0 %v880
    %1429 = vmatpush.bf16.msra.mxu0 %v876
    %1430 = vmatpush.bf16.msra.mxu0 %v872
    %1431 = vmatpush.bf16.msra.mxu0 %v868
    %1432 = vmatpush.bf16.msra.mxu0 %v864
    %1433 = vmatpush.bf16.msra.mxu0 %v860
    %1434 = vmatpush.bf16.msra.mxu0 %v856
    %1435 = vmatpush.bf16.msra.mxu0 %v852
    %1436 = vmatmul.bf16.gmra.mxu0 %v49
    %v1437 = vpop.f32.mrf.mxu0
    %v1438 = vadd.f32 %v256, %v1437
    %v1439 = vpop.f32.mrf.mxu0
    %1440 = vdwg.mxu0
    %1441 = vmatpush.bf16.msra.mxu0 %v912
    %1442 = vmatpush.bf16.msra.mxu0 %v908
    %1443 = vmatpush.bf16.msra.mxu0 %v904
    %1444 = vmatpush.bf16.msra.mxu0 %v900
    %1445 = vmatpush.bf16.msra.mxu0 %v896
    %1446 = vmatpush.bf16.msra.mxu0 %v892
    %1447 = vmatpush.bf16.msra.mxu0 %v888
    %1448 = vmatpush.bf16.msra.mxu0 %v884
    %1449 = vmatmul.bf16.gmra.mxu0 %v50
    %v1450 = vpop.f32.mrf.mxu0
    %v1451 = vadd.f32 %v1438, %v1450
    %v1452 = vpop.f32.mrf.mxu0
    %1453 = vdwg.mxu0
    %1454 = vmatpush.bf16.msra.mxu0 %v944
    %1455 = vmatpush.bf16.msra.mxu0 %v940
    %1456 = vmatpush.bf16.msra.mxu0 %v936
    %1457 = vmatpush.bf16.msra.mxu0 %v932
    %1458 = vmatpush.bf16.msra.mxu0 %v928
    %1459 = vmatpush.bf16.msra.mxu0 %v924
    %1460 = vmatpush.bf16.msra.mxu0 %v920
    %1461 = vmatpush.bf16.msra.mxu0 %v916
    %1462 = vmatmul.bf16.gmra.mxu0 %v51
    %v1463 = vpop.f32.mrf.mxu0
    %v1464 = vadd.f32 %v1451, %v1463
    %v1465 = vpop.f32.mrf.mxu0
    %1466 = vdwg.mxu0
    %1467 = vmatpush.bf16.msra.mxu0 %v976
    %1468 = vmatpush.bf16.msra.mxu0 %v972
    %1469 = vmatpush.bf16.msra.mxu0 %v968
    %1470 = vmatpush.bf16.msra.mxu0 %v964
    %1471 = vmatpush.bf16.msra.mxu0 %v960
    %1472 = vmatpush.bf16.msra.mxu0 %v956
    %1473 = vmatpush.bf16.msra.mxu0 %v952
    %1474 = vmatpush.bf16.msra.mxu0 %v948
    %1475 = vmatmul.bf16.gmra.mxu0 %v52
    %v1476 = vpop.f32.mrf.mxu0
    %v1477 = vadd.f32 %v1464, %v1476
    %v1478 = vpop.f32.mrf.mxu0
    %1479 = vdwg.mxu0
    %1480 = vmatpush.bf16.msra.mxu0 %v1008
    %1481 = vmatpush.bf16.msra.mxu0 %v1004
    %1482 = vmatpush.bf16.msra.mxu0 %v1000
    %1483 = vmatpush.bf16.msra.mxu0 %v996
    %1484 = vmatpush.bf16.msra.mxu0 %v992
    %1485 = vmatpush.bf16.msra.mxu0 %v988
    %1486 = vmatpush.bf16.msra.mxu0 %v984
    %1487 = vmatpush.bf16.msra.mxu0 %v980
    %1488 = vmatmul.bf16.gmra.mxu0 %v53
    %v1489 = vpop.f32.mrf.mxu0
    %v1490 = vadd.f32 %v1477, %v1489
    %v1491 = vpop.f32.mrf.mxu0
    %1492 = vdwg.mxu0
    %1493 = vmatpush.bf16.msra.mxu0 %v1040
    %1494 = vmatpush.bf16.msra.mxu0 %v1036
    %1495 = vmatpush.bf16.msra.mxu0 %v1032
    %1496 = vmatpush.bf16.msra.mxu0 %v1028
    %1497 = vmatpush.bf16.msra.mxu0 %v1024
    %1498 = vmatpush.bf16.msra.mxu0 %v1020
    %1499 = vmatpush.bf16.msra.mxu0 %v1016
    %1500 = vmatpush.bf16.msra.mxu0 %v1012
    %1501 = vmatmul.bf16.gmra.mxu0 %v54
    %v1502 = vpop.f32.mrf.mxu0
    %v1503 = vadd.f32 %v1490, %v1502
    %v1504 = vpop.f32.mrf.mxu0
    %1505 = vdwg.mxu0
    %1506 = vmatpush.bf16.msra.mxu0 0
    %1507 = vmatpush.bf16.msra.mxu0 0
    %1508 = vmatpush.bf16.msra.mxu0 0
    %1509 = vmatpush.bf16.msra.mxu0 0
    %1510 = vmatpush.bf16.msra.mxu0 0
    %1511 = vmatpush.bf16.msra.mxu0 0
    %1512 = vmatpush.bf16.msra.mxu0 0
    %1513 = vmatpush.bf16.msra.mxu0 %v1044
    %1514 = vmatmul.bf16.gmra.mxu0 %v1244
    %v1515 = vpop.f32.mrf.mxu0
    %v1516 = vadd.f32 %v1503, %v1515
    %v1517 = vpop.f32.mrf.mxu0
    %1518 = vdwg.mxu0
    %1519 = vmatpush.bf16.msra.mxu0 %v881
    %1520 = vmatpush.bf16.msra.mxu0 %v877
    %1521 = vmatpush.bf16.msra.mxu0 %v873
    %1522 = vmatpush.bf16.msra.mxu0 %v869
    %1523 = vmatpush.bf16.msra.mxu0 %v865
    %1524 = vmatpush.bf16.msra.mxu0 %v861
    %1525 = vmatpush.bf16.msra.mxu0 %v857
    %1526 = vmatpush.bf16.msra.mxu0 %v853
    %1527 = vmatmul.bf16.gmra.mxu0 %v49
    %v1528 = vpop.f32.mrf.mxu0
    %v1529 = vadd.f32 %v257, %v1528
    %v1530 = vpop.f32.mrf.mxu0
    %1531 = vdwg.mxu0
    %1532 = vmatpush.bf16.msra.mxu0 %v913
    %1533 = vmatpush.bf16.msra.mxu0 %v909
    %1534 = vmatpush.bf16.msra.mxu0 %v905
    %1535 = vmatpush.bf16.msra.mxu0 %v901
    %1536 = vmatpush.bf16.msra.mxu0 %v897
    %1537 = vmatpush.bf16.msra.mxu0 %v893
    %1538 = vmatpush.bf16.msra.mxu0 %v889
    %1539 = vmatpush.bf16.msra.mxu0 %v885
    %1540 = vmatmul.bf16.gmra.mxu0 %v50
    %v1541 = vpop.f32.mrf.mxu0
    %v1542 = vadd.f32 %v1529, %v1541
    %v1543 = vpop.f32.mrf.mxu0
    %1544 = vdwg.mxu0
    %1545 = vmatpush.bf16.msra.mxu0 %v945
    %1546 = vmatpush.bf16.msra.mxu0 %v941
    %1547 = vmatpush.bf16.msra.mxu0 %v937
    %1548 = vmatpush.bf16.msra.mxu0 %v933
    %1549 = vmatpush.bf16.msra.mxu0 %v929
    %1550 = vmatpush.bf16.msra.mxu0 %v925
    %1551 = vmatpush.bf16.msra.mxu0 %v921
    %1552 = vmatpush.bf16.msra.mxu0 %v917
    %1553 = vmatmul.bf16.gmra.mxu0 %v51
    %v1554 = vpop.f32.mrf.mxu0
    %v1555 = vadd.f32 %v1542, %v1554
    %v1556 = vpop.f32.mrf.mxu0
    %1557 = vdwg.mxu0
    %1558 = vmatpush.bf16.msra.mxu0 %v977
    %1559 = vmatpush.bf16.msra.mxu0 %v973
    %1560 = vmatpush.bf16.msra.mxu0 %v969
    %1561 = vmatpush.bf16.msra.mxu0 %v965
    %1562 = vmatpush.bf16.msra.mxu0 %v961
    %1563 = vmatpush.bf16.msra.mxu0 %v957
    %1564 = vmatpush.bf16.msra.mxu0 %v953
    %1565 = vmatpush.bf16.msra.mxu0 %v949
    %1566 = vmatmul.bf16.gmra.mxu0 %v52
    %v1567 = vpop.f32.mrf.mxu0
    %v1568 = vadd.f32 %v1555, %v1567
    %v1569 = vpop.f32.mrf.mxu0
    %1570 = vdwg.mxu0
    %1571 = vmatpush.bf16.msra.mxu0 %v1009
    %1572 = vmatpush.bf16.msra.mxu0 %v1005
    %1573 = vmatpush.bf16.msra.mxu0 %v1001
    %1574 = vmatpush.bf16.msra.mxu0 %v997
    %1575 = vmatpush.bf16.msra.mxu0 %v993
    %1576 = vmatpush.bf16.msra.mxu0 %v989
    %1577 = vmatpush.bf16.msra.mxu0 %v985
    %1578 = vmatpush.bf16.msra.mxu0 %v981
    %1579 = vmatmul.bf16.gmra.mxu0 %v53
    %v1580 = vpop.f32.mrf.mxu0
    %v1581 = vadd.f32 %v1568, %v1580
    %v1582 = vpop.f32.mrf.mxu0
    %1583 = vdwg.mxu0
    %1584 = vmatpush.bf16.msra.mxu0 %v1041
    %1585 = vmatpush.bf16.msra.mxu0 %v1037
    %1586 = vmatpush.bf16.msra.mxu0 %v1033
    %1587 = vmatpush.bf16.msra.mxu0 %v1029
    %1588 = vmatpush.bf16.msra.mxu0 %v1025
    %1589 = vmatpush.bf16.msra.mxu0 %v1021
    %1590 = vmatpush.bf16.msra.mxu0 %v1017
    %1591 = vmatpush.bf16.msra.mxu0 %v1013
    %1592 = vmatmul.bf16.gmra.mxu0 %v54
    %v1593 = vpop.f32.mrf.mxu0
    %v1594 = vadd.f32 %v1581, %v1593
    %v1595 = vpop.f32.mrf.mxu0
    %1596 = vdwg.mxu0
    %1597 = vmatpush.bf16.msra.mxu0 0
    %1598 = vmatpush.bf16.msra.mxu0 0
    %1599 = vmatpush.bf16.msra.mxu0 0
    %1600 = vmatpush.bf16.msra.mxu0 0
    %1601 = vmatpush.bf16.msra.mxu0 0
    %1602 = vmatpush.bf16.msra.mxu0 0
    %1603 = vmatpush.bf16.msra.mxu0 0
    %1604 = vmatpush.bf16.msra.mxu0 %v1045
    %1605 = vmatmul.bf16.gmra.mxu0 %v1244
    %v1606 = vpop.f32.mrf.mxu0
    %v1607 = vadd.f32 %v1594, %v1606
    %v1608 = vpop.f32.mrf.mxu0
    %1609 = vdwg.mxu0
    %v1610 = vmax.f32 %v1334, 0.0
    %v1611 = vmax.f32 %v1425, 0.0
    %v1612 = vmax.f32 %v1516, 0.0
    %v1613 = vmax.f32 %v1607, 0.0
    %v1614 = vpack.c.bf16 %v1610, %v1610
    %v1615 = vpack.c.bf16 %v1611, %v1611
    %v1616 = vpack.c.bf16 %v1612, %v1612
    %v1617 = vpack.c.bf16 %v1613, %v1613
    %v1618 = vld [vmem:[%s3] sm:$0xff]
    %v1619 = vld [vmem:[%s3 + $0x8] sm:$0xff]
    %v1620 = vld [vmem:[%s3 + $0x10] sm:$0xff]
    %v1621 = vld [vmem:[%s3 + $0x18] sm:$0xff]
    %v1622 = vld [vmem:[%s3 + $0x20] sm:$0xff]
    %v1623 = vld [vmem:[%s3 + $0x28] sm:$0xff]
    %v1624 = vld [vmem:[%s3 + $0x30] sm:$0xff]
    %v1625 = vld [vmem:[%s3 + $0x38] sm:$0xff]
    %v1626 = vld [vmem:[%s3 + $0x40] sm:$0xff]
    %v1627 = vld [vmem:[%s3 + $0x48] sm:$0xff]
    %v1628 = vld [vmem:[%s3 + $0x50] sm:$0xff]
    %v1629 = vld [vmem:[%s3 + $0x58] sm:$0xff]
    %v1630 = vld [vmem:[%s3 + $0x60] sm:$0xff]
    %v1631 = vld [vmem:[%s3 + $0x68] sm:$0xff]
    %v1632 = vld [vmem:[%s3 + $0x70] sm:$0xff]
    %v1633 = vld [vmem:[%s3 + $0x78] sm:$0xff]
    %v1634 = vld [vmem:[%s3 + $0x80] sm:$0xff]
    %v1635 = vld [vmem:[%s3 + $0x88] sm:$0xff]
    %v1636 = vld [vmem:[%s3 + $0x90] sm:$0xff]
    %v1637 = vld [vmem:[%s3 + $0x98] sm:$0xff]
    %v1638 = vld [vmem:[%s3 + $0xa0] sm:$0xff]
    %v1639 = vld [vmem:[%s3 + $0xa8] sm:$0xff]
    %v1640 = vld [vmem:[%s3 + $0xb0] sm:$0xff]
    %v1641 = vld [vmem:[%s3 + $0xb8] sm:$0xff]
    %v1642 = vld [vmem:[%s3 + $0xc0] sm:$0xff]
    %v1643 = vld [vmem:[%s3 + $0xc8] sm:$0xff]
    %v1644 = vld [vmem:[%s3 + $0xd0] sm:$0xff]
    %v1645 = vld [vmem:[%s3 + $0xd8] sm:$0xff]
    %v1646 = vld [vmem:[%s3 + $0xe0] sm:$0xff]
    %v1647 = vld [vmem:[%s3 + $0xe8] sm:$0xff]
    %v1648 = vld [vmem:[%s3 + $0xf0] sm:$0xff]
    %v1649 = vld [vmem:[%s3 + $0xf8] sm:$0xff]
    %v1650 = vld [vmem:[%s3 + $0x100] sm:$0xff]
    %v1651 = vld [vmem:[%s3 + $0x108] sm:$0xff]
    %v1652 = vld [vmem:[%s3 + $0x110] sm:$0xff]
    %v1653 = vld [vmem:[%s3 + $0x118] sm:$0xff]
    %v1654 = vld [vmem:[%s3 + $0x120] sm:$0xff]
    %v1655 = vld [vmem:[%s3 + $0x128] sm:$0xff]
    %v1656 = vld [vmem:[%s3 + $0x130] sm:$0xff]
    %v1657 = vld [vmem:[%s3 + $0x138] sm:$0xff]
    %v1658 = vld [vmem:[%s3 + $0x140] sm:$0xff]
    %v1659 = vld [vmem:[%s3 + $0x148] sm:$0xff]
    %v1660 = vld [vmem:[%s3 + $0x150] sm:$0xff]
    %v1661 = vld [vmem:[%s3 + $0x158] sm:$0xff]
    %v1662 = vld [vmem:[%s3 + $0x160] sm:$0xff]
    %v1663 = vld [vmem:[%s3 + $0x168] sm:$0xff]
    %v1664 = vld [vmem:[%s3 + $0x170] sm:$0xff]
    %v1665 = vld [vmem:[%s3 + $0x178] sm:$0xff]
    %v1666 = vld [vmem:[%s3 + $0x180] sm:$0xff]
    %v1667 = vld [vmem:[%s3 + $0x188] sm:$0xff]
    %v1668 = vld [vmem:[%s3 + $0x190] sm:$0xff]
    %v1669 = vld [vmem:[%s3 + $0x198] sm:$0xff]
    %v1670 = vld [vmem:[%s3 + $0x1a0] sm:$0xff]
    %v1671 = vld [vmem:[%s3 + $0x1a8] sm:$0xff]
    %v1672 = vld [vmem:[%s3 + $0x1b0] sm:$0xff]
    %v1673 = vld [vmem:[%s3 + $0x1b8] sm:$0xff]
    %v1674 = vld [vmem:[%s3 + $0x1c0] sm:$0xff]
    %v1675 = vld [vmem:[%s3 + $0x1c8] sm:$0xff]
    %v1676 = vld [vmem:[%s3 + $0x1d0] sm:$0xff]
    %v1677 = vld [vmem:[%s3 + $0x1d8] sm:$0xff]
    %v1678 = vld [vmem:[%s3 + $0x1e0] sm:$0xff]
    %v1679 = vld [vmem:[%s3 + $0x1e8] sm:$0xff]
    %v1680 = vld [vmem:[%s3 + $0x1f0] sm:$0xff]
    %v1681 = vld [vmem:[%s3 + $0x1f8] sm:$0xff]
    %v1682 = vld [vmem:[%s4] sm:$0x3]
    %v1684 = vperm.slane %v1682, 0
    %v1685 = vperm.slane %v1682, 1
    %v1752 = vunpack.c.l.b16 %v1618
    %v1753 = vunpack.c.h.b16 %v1618
    %v1754 = vunpack.c.l.b16 %v1619
    %v1755 = vunpack.c.h.b16 %v1619
    %v1756 = vunpack.c.l.b16 %v1620
    %v1757 = vunpack.c.h.b16 %v1620
    %v1758 = vunpack.c.l.b16 %v1621
    %v1759 = vunpack.c.h.b16 %v1621
    %v1760 = vunpack.c.l.b16 %v1622
    %v1761 = vunpack.c.h.b16 %v1622
    %v1762 = vunpack.c.l.b16 %v1623
    %v1763 = vunpack.c.h.b16 %v1623
    %v1764 = vunpack.c.l.b16 %v1624
    %v1765 = vunpack.c.h.b16 %v1624
    %v1766 = vunpack.c.l.b16 %v1625
    %v1767 = vunpack.c.h.b16 %v1625
    %v1768 = vunpack.c.l.b16 %v1626
    %v1769 = vunpack.c.h.b16 %v1626
    %v1770 = vunpack.c.l.b16 %v1627
    %v1771 = vunpack.c.h.b16 %v1627
    %v1772 = vunpack.c.l.b16 %v1628
    %v1773 = vunpack.c.h.b16 %v1628
    %v1774 = vunpack.c.l.b16 %v1629
    %v1775 = vunpack.c.h.b16 %v1629
    %v1776 = vunpack.c.l.b16 %v1630
    %v1777 = vunpack.c.h.b16 %v1630
    %v1778 = vunpack.c.l.b16 %v1631
    %v1779 = vunpack.c.h.b16 %v1631
    %v1780 = vunpack.c.l.b16 %v1632
    %v1781 = vunpack.c.h.b16 %v1632
    %v1782 = vunpack.c.l.b16 %v1633
    %v1783 = vunpack.c.h.b16 %v1633
    %v1784 = vunpack.c.l.b16 %v1634
    %v1785 = vunpack.c.h.b16 %v1634
    %v1786 = vunpack.c.l.b16 %v1635
    %v1787 = vunpack.c.h.b16 %v1635
    %v1788 = vunpack.c.l.b16 %v1636
    %v1789 = vunpack.c.h.b16 %v1636
    %v1790 = vunpack.c.l.b16 %v1637
    %v1791 = vunpack.c.h.b16 %v1637
    %v1792 = vunpack.c.l.b16 %v1638
    %v1793 = vunpack.c.h.b16 %v1638
    %v1794 = vunpack.c.l.b16 %v1639
    %v1795 = vunpack.c.h.b16 %v1639
    %v1796 = vunpack.c.l.b16 %v1640
    %v1797 = vunpack.c.h.b16 %v1640
    %v1798 = vunpack.c.l.b16 %v1641
    %v1799 = vunpack.c.h.b16 %v1641
    %v1800 = vunpack.c.l.b16 %v1642
    %v1801 = vunpack.c.h.b16 %v1642
    %v1802 = vunpack.c.l.b16 %v1643
    %v1803 = vunpack.c.h.b16 %v1643
    %v1804 = vunpack.c.l.b16 %v1644
    %v1805 = vunpack.c.h.b16 %v1644
    %v1806 = vunpack.c.l.b16 %v1645
    %v1807 = vunpack.c.h.b16 %v1645
    %v1808 = vunpack.c.l.b16 %v1646
    %v1809 = vunpack.c.h.b16 %v1646
    %v1810 = vunpack.c.l.b16 %v1647
    %v1811 = vunpack.c.h.b16 %v1647
    %v1812 = vunpack.c.l.b16 %v1648
    %v1813 = vunpack.c.h.b16 %v1648
    %v1814 = vunpack.c.l.b16 %v1649
    %v1815 = vunpack.c.h.b16 %v1649
    %v1816 = vunpack.c.l.b16 %v1650
    %v1817 = vunpack.c.h.b16 %v1650
    %v1818 = vunpack.c.l.b16 %v1651
    %v1819 = vunpack.c.h.b16 %v1651
    %v1820 = vunpack.c.l.b16 %v1652
    %v1821 = vunpack.c.h.b16 %v1652
    %v1822 = vunpack.c.l.b16 %v1653
    %v1823 = vunpack.c.h.b16 %v1653
    %v1824 = vunpack.c.l.b16 %v1654
    %v1825 = vunpack.c.h.b16 %v1654
    %v1826 = vunpack.c.l.b16 %v1655
    %v1827 = vunpack.c.h.b16 %v1655
    %v1828 = vunpack.c.l.b16 %v1656
    %v1829 = vunpack.c.h.b16 %v1656
    %v1830 = vunpack.c.l.b16 %v1657
    %v1831 = vunpack.c.h.b16 %v1657
    %v1832 = vunpack.c.l.b16 %v1658
    %v1833 = vunpack.c.h.b16 %v1658
    %v1834 = vunpack.c.l.b16 %v1659
    %v1835 = vunpack.c.h.b16 %v1659
    %v1836 = vunpack.c.l.b16 %v1660
    %v1837 = vunpack.c.h.b16 %v1660
    %v1838 = vunpack.c.l.b16 %v1661
    %v1839 = vunpack.c.h.b16 %v1661
    %v1840 = vunpack.c.l.b16 %v1662
    %v1841 = vunpack.c.h.b16 %v1662
    %v1842 = vunpack.c.l.b16 %v1663
    %v1843 = vunpack.c.h.b16 %v1663
    %v1844 = vunpack.c.l.b16 %v1664
    %v1845 = vunpack.c.h.b16 %v1664
    %v1846 = vunpack.c.l.b16 %v1665
    %v1847 = vunpack.c.h.b16 %v1665
    %v1848 = vunpack.c.l.b16 %v1666
    %v1849 = vunpack.c.h.b16 %v1666
    %v1850 = vunpack.c.l.b16 %v1667
    %v1851 = vunpack.c.h.b16 %v1667
    %v1852 = vunpack.c.l.b16 %v1668
    %v1853 = vunpack.c.h.b16 %v1668
    %v1854 = vunpack.c.l.b16 %v1669
    %v1855 = vunpack.c.h.b16 %v1669
    %v1856 = vunpack.c.l.b16 %v1670
    %v1857 = vunpack.c.h.b16 %v1670
    %v1858 = vunpack.c.l.b16 %v1671
    %v1859 = vunpack.c.h.b16 %v1671
    %v1860 = vunpack.c.l.b16 %v1672
    %v1861 = vunpack.c.h.b16 %v1672
    %v1862 = vunpack.c.l.b16 %v1673
    %v1863 = vunpack.c.h.b16 %v1673
    %v1864 = vunpack.c.l.b16 %v1674
    %v1865 = vunpack.c.h.b16 %v1674
    %v1866 = vunpack.c.l.b16 %v1675
    %v1867 = vunpack.c.h.b16 %v1675
    %v1868 = vunpack.c.l.b16 %v1676
    %v1869 = vunpack.c.h.b16 %v1676
    %v1870 = vunpack.c.l.b16 %v1677
    %v1871 = vunpack.c.h.b16 %v1677
    %v1872 = vunpack.c.l.b16 %v1678
    %v1873 = vunpack.c.h.b16 %v1678
    %v1874 = vunpack.c.l.b16 %v1679
    %v1875 = vunpack.c.h.b16 %v1679
    %v1876 = vunpack.c.l.b16 %v1680
    %v1877 = vunpack.c.h.b16 %v1680
    %v1878 = vunpack.c.l.b16 %v1681
    %v1879 = vunpack.c.h.b16 %v1681
    %v1880 = vpack.c.b16 %v1754, %v1752
    %v1881 = vpack.c.b16 %v1755, %v1753
    %v1882 = vpack.c.b16 %v1758, %v1756
    %v1883 = vpack.c.b16 %v1759, %v1757
    %v1884 = vpack.c.b16 %v1762, %v1760
    %v1885 = vpack.c.b16 %v1763, %v1761
    %v1886 = vpack.c.b16 %v1766, %v1764
    %v1887 = vpack.c.b16 %v1767, %v1765
    %v1888 = vpack.c.b16 %v1770, %v1768
    %v1889 = vpack.c.b16 %v1771, %v1769
    %v1890 = vpack.c.b16 %v1774, %v1772
    %v1891 = vpack.c.b16 %v1775, %v1773
    %v1892 = vpack.c.b16 %v1778, %v1776
    %v1893 = vpack.c.b16 %v1779, %v1777
    %v1894 = vpack.c.b16 %v1782, %v1780
    %v1895 = vpack.c.b16 %v1783, %v1781
    %v1896 = vpack.c.b16 %v1786, %v1784
    %v1897 = vpack.c.b16 %v1787, %v1785
    %v1898 = vpack.c.b16 %v1790, %v1788
    %v1899 = vpack.c.b16 %v1791, %v1789
    %v1900 = vpack.c.b16 %v1794, %v1792
    %v1901 = vpack.c.b16 %v1795, %v1793
    %v1902 = vpack.c.b16 %v1798, %v1796
    %v1903 = vpack.c.b16 %v1799, %v1797
    %v1904 = vpack.c.b16 %v1802, %v1800
    %v1905 = vpack.c.b16 %v1803, %v1801
    %v1906 = vpack.c.b16 %v1806, %v1804
    %v1907 = vpack.c.b16 %v1807, %v1805
    %v1908 = vpack.c.b16 %v1810, %v1808
    %v1909 = vpack.c.b16 %v1811, %v1809
    %v1910 = vpack.c.b16 %v1814, %v1812
    %v1911 = vpack.c.b16 %v1815, %v1813
    %v1912 = vpack.c.b16 %v1818, %v1816
    %v1913 = vpack.c.b16 %v1819, %v1817
    %v1914 = vpack.c.b16 %v1822, %v1820
    %v1915 = vpack.c.b16 %v1823, %v1821
    %v1916 = vpack.c.b16 %v1826, %v1824
    %v1917 = vpack.c.b16 %v1827, %v1825
    %v1918 = vpack.c.b16 %v1830, %v1828
    %v1919 = vpack.c.b16 %v1831, %v1829
    %v1920 = vpack.c.b16 %v1834, %v1832
    %v1921 = vpack.c.b16 %v1835, %v1833
    %v1922 = vpack.c.b16 %v1838, %v1836
    %v1923 = vpack.c.b16 %v1839, %v1837
    %v1924 = vpack.c.b16 %v1842, %v1840
    %v1925 = vpack.c.b16 %v1843, %v1841
    %v1926 = vpack.c.b16 %v1846, %v1844
    %v1927 = vpack.c.b16 %v1847, %v1845
    %v1928 = vpack.c.b16 %v1850, %v1848
    %v1929 = vpack.c.b16 %v1851, %v1849
    %v1930 = vpack.c.b16 %v1854, %v1852
    %v1931 = vpack.c.b16 %v1855, %v1853
    %v1932 = vpack.c.b16 %v1858, %v1856
    %v1933 = vpack.c.b16 %v1859, %v1857
    %v1934 = vpack.c.b16 %v1862, %v1860
    %v1935 = vpack.c.b16 %v1863, %v1861
    %v1936 = vpack.c.b16 %v1866, %v1864
    %v1937 = vpack.c.b16 %v1867, %v1865
    %v1938 = vpack.c.b16 %v1870, %v1868
    %v1939 = vpack.c.b16 %v1871, %v1869
    %v1940 = vpack.c.b16 %v1874, %v1872
    %v1941 = vpack.c.b16 %v1875, %v1873
    %v1942 = vpack.c.b16 %v1878, %v1876
    %v1943 = vpack.c.b16 %v1879, %v1877
    %2008 = vmatpush.bf16.msra.mxu0 %v1894
    %2009 = vmatpush.bf16.msra.mxu0 %v1892
    %2010 = vmatpush.bf16.msra.mxu0 %v1890
    %2011 = vmatpush.bf16.msra.mxu0 %v1888
    %2012 = vmatpush.bf16.msra.mxu0 %v1886
    %2013 = vmatpush.bf16.msra.mxu0 %v1884
    %2014 = vmatpush.bf16.msra.mxu0 %v1882
    %2015 = vmatpush.bf16.msra.mxu0 %v1880
    %2016 = vmatmul.bf16.gmra.mxu0 %v1614
    %v2017 = vpop.f32.mrf.mxu0
    %v2018 = vadd.f32 %v1684, %v2017
    %v2019 = vpop.f32.mrf.mxu0
    %2020 = vdwg.mxu0
    %2021 = vmatpush.bf16.msra.mxu0 %v1910
    %2022 = vmatpush.bf16.msra.mxu0 %v1908
    %2023 = vmatpush.bf16.msra.mxu0 %v1906
    %2024 = vmatpush.bf16.msra.mxu0 %v1904
    %2025 = vmatpush.bf16.msra.mxu0 %v1902
    %2026 = vmatpush.bf16.msra.mxu0 %v1900
    %2027 = vmatpush.bf16.msra.mxu0 %v1898
    %2028 = vmatpush.bf16.msra.mxu0 %v1896
    %2029 = vmatmul.bf16.gmra.mxu0 %v1615
    %v2030 = vpop.f32.mrf.mxu0
    %v2031 = vadd.f32 %v2018, %v2030
    %v2032 = vpop.f32.mrf.mxu0
    %2033 = vdwg.mxu0
    %2034 = vmatpush.bf16.msra.mxu0 %v1926
    %2035 = vmatpush.bf16.msra.mxu0 %v1924
    %2036 = vmatpush.bf16.msra.mxu0 %v1922
    %2037 = vmatpush.bf16.msra.mxu0 %v1920
    %2038 = vmatpush.bf16.msra.mxu0 %v1918
    %2039 = vmatpush.bf16.msra.mxu0 %v1916
    %2040 = vmatpush.bf16.msra.mxu0 %v1914
    %2041 = vmatpush.bf16.msra.mxu0 %v1912
    %2042 = vmatmul.bf16.gmra.mxu0 %v1616
    %v2043 = vpop.f32.mrf.mxu0
    %v2044 = vadd.f32 %v2031, %v2043
    %v2045 = vpop.f32.mrf.mxu0
    %2046 = vdwg.mxu0
    %2047 = vmatpush.bf16.msra.mxu0 %v1942
    %2048 = vmatpush.bf16.msra.mxu0 %v1940
    %2049 = vmatpush.bf16.msra.mxu0 %v1938
    %2050 = vmatpush.bf16.msra.mxu0 %v1936
    %2051 = vmatpush.bf16.msra.mxu0 %v1934
    %2052 = vmatpush.bf16.msra.mxu0 %v1932
    %2053 = vmatpush.bf16.msra.mxu0 %v1930
    %2054 = vmatpush.bf16.msra.mxu0 %v1928
    %2055 = vmatmul.bf16.gmra.mxu0 %v1617
    %v2056 = vpop.f32.mrf.mxu0
    %v2057 = vadd.f32 %v2044, %v2056
    %v2058 = vpop.f32.mrf.mxu0
    %2059 = vdwg.mxu0
    %2060 = vmatpush.bf16.msra.mxu0 %v1895
    %2061 = vmatpush.bf16.msra.mxu0 %v1893
    %2062 = vmatpush.bf16.msra.mxu0 %v1891
    %2063 = vmatpush.bf16.msra.mxu0 %v1889
    %2064 = vmatpush.bf16.msra.mxu0 %v1887
    %2065 = vmatpush.bf16.msra.mxu0 %v1885
    %2066 = vmatpush.bf16.msra.mxu0 %v1883
    %2067 = vmatpush.bf16.msra.mxu0 %v1881
    %2068 = vmatmul.bf16.gmra.mxu0 %v1614
    %v2069 = vpop.f32.mrf.mxu0
    %v2070 = vadd.f32 %v1685, %v2069
    %v2071 = vpop.f32.mrf.mxu0
    %2072 = vdwg.mxu0
    %2073 = vmatpush.bf16.msra.mxu0 %v1911
    %2074 = vmatpush.bf16.msra.mxu0 %v1909
    %2075 = vmatpush.bf16.msra.mxu0 %v1907
    %2076 = vmatpush.bf16.msra.mxu0 %v1905
    %2077 = vmatpush.bf16.msra.mxu0 %v1903
    %2078 = vmatpush.bf16.msra.mxu0 %v1901
    %2079 = vmatpush.bf16.msra.mxu0 %v1899
    %2080 = vmatpush.bf16.msra.mxu0 %v1897
    %2081 = vmatmul.bf16.gmra.mxu0 %v1615
    %v2082 = vpop.f32.mrf.mxu0
    %v2083 = vadd.f32 %v2070, %v2082
    %v2084 = vpop.f32.mrf.mxu0
    %2085 = vdwg.mxu0
    %2086 = vmatpush.bf16.msra.mxu0 %v1927
    %2087 = vmatpush.bf16.msra.mxu0 %v1925
    %2088 = vmatpush.bf16.msra.mxu0 %v1923
    %2089 = vmatpush.bf16.msra.mxu0 %v1921
    %2090 = vmatpush.bf16.msra.mxu0 %v1919
    %2091 = vmatpush.bf16.msra.mxu0 %v1917
    %2092 = vmatpush.bf16.msra.mxu0 %v1915
    %2093 = vmatpush.bf16.msra.mxu0 %v1913
    %2094 = vmatmul.bf16.gmra.mxu0 %v1616
    %v2095 = vpop.f32.mrf.mxu0
    %v2096 = vadd.f32 %v2083, %v2095
    %v2097 = vpop.f32.mrf.mxu0
    %2098 = vdwg.mxu0
    %2099 = vmatpush.bf16.msra.mxu0 %v1943
    %2100 = vmatpush.bf16.msra.mxu0 %v1941
    %2101 = vmatpush.bf16.msra.mxu0 %v1939
    %2102 = vmatpush.bf16.msra.mxu0 %v1937
    %2103 = vmatpush.bf16.msra.mxu0 %v1935
    %2104 = vmatpush.bf16.msra.mxu0 %v1933
    %2105 = vmatpush.bf16.msra.mxu0 %v1931
    %2106 = vmatpush.bf16.msra.mxu0 %v1929
    %2107 = vmatmul.bf16.gmra.mxu0 %v1617
    %v2108 = vpop.f32.mrf.mxu0
    %v2109 = vadd.f32 %v2096, %v2108
    %v2110 = vpop.f32.mrf.mxu0
    %2111 = vdwg.mxu0
    %v2112 = vmax.f32 %v2057, 0.0
    %v2113 = vmax.f32 %v2109, 0.0
    %v2114 = vpack.c.bf16 %v2112, %v2112
    %v2115 = vpack.c.bf16 %v2113, %v2113
    %v2116 = vld [vmem:[%s5] sm:$0xf]
    %v2117 = vld [vmem:[%s5 + $0x4] sm:$0xf]
    %v2118 = vld [vmem:[%s5 + $0x8] sm:$0xf]
    %v2119 = vld [vmem:[%s5 + $0xc] sm:$0xf]
    %v2120 = vld [vmem:[%s5 + $0x10] sm:$0xf]
    %v2121 = vld [vmem:[%s5 + $0x14] sm:$0xf]
    %v2122 = vld [vmem:[%s5 + $0x18] sm:$0xf]
    %v2123 = vld [vmem:[%s5 + $0x1c] sm:$0xf]
    %v2124 = vld [vmem:[%s5 + $0x20] sm:$0xf]
    %v2125 = vld [vmem:[%s5 + $0x24] sm:$0xf]
    %v2126 = vld [vmem:[%s5 + $0x28] sm:$0xf]
    %v2127 = vld [vmem:[%s5 + $0x2c] sm:$0xf]
    %v2128 = vld [vmem:[%s5 + $0x30] sm:$0xf]
    %v2129 = vld [vmem:[%s5 + $0x34] sm:$0xf]
    %v2130 = vld [vmem:[%s5 + $0x38] sm:$0xf]
    %v2131 = vld [vmem:[%s5 + $0x3c] sm:$0xf]
    %v2132 = vld [vmem:[%s5 + $0x40] sm:$0xf]
    %v2133 = vld [vmem:[%s5 + $0x44] sm:$0xf]
    %v2134 = vld [vmem:[%s5 + $0x48] sm:$0xf]
    %v2135 = vld [vmem:[%s5 + $0x4c] sm:$0xf]
    %v2136 = vld [vmem:[%s5 + $0x50] sm:$0xf]
    %v2137 = vld [vmem:[%s5 + $0x54] sm:$0xf]
    %v2138 = vld [vmem:[%s5 + $0x58] sm:$0xf]
    %v2139 = vld [vmem:[%s5 + $0x5c] sm:$0xf]
    %v2140 = vld [vmem:[%s5 + $0x60] sm:$0xf]
    %v2141 = vld [vmem:[%s5 + $0x64] sm:$0xf]
    %v2142 = vld [vmem:[%s5 + $0x68] sm:$0xf]
    %v2143 = vld [vmem:[%s5 + $0x6c] sm:$0xf]
    %v2144 = vld [vmem:[%s5 + $0x70] sm:$0xf]
    %v2145 = vld [vmem:[%s5 + $0x74] sm:$0xf]
    %v2146 = vld [vmem:[%s5 + $0x78] sm:$0xf]
    %v2147 = vld [vmem:[%s5 + $0x7c] sm:$0xf]
    %v2148 = vld [vmem:[%s6] sm:$0x1]
    %v2150 = vperm.slane %v2148, 0
    %v2184 = vunpack.c.l.b16 %v2116
    %v2185 = vunpack.c.l.b16 %v2117
    %v2186 = vunpack.c.l.b16 %v2118
    %v2187 = vunpack.c.l.b16 %v2119
    %v2188 = vunpack.c.l.b16 %v2120
    %v2189 = vunpack.c.l.b16 %v2121
    %v2190 = vunpack.c.l.b16 %v2122
    %v2191 = vunpack.c.l.b16 %v2123
    %v2192 = vunpack.c.l.b16 %v2124
    %v2193 = vunpack.c.l.b16 %v2125
    %v2194 = vunpack.c.l.b16 %v2126
    %v2195 = vunpack.c.l.b16 %v2127
    %v2196 = vunpack.c.l.b16 %v2128
    %v2197 = vunpack.c.l.b16 %v2129
    %v2198 = vunpack.c.l.b16 %v2130
    %v2199 = vunpack.c.l.b16 %v2131
    %v2200 = vunpack.c.l.b16 %v2132
    %v2201 = vunpack.c.l.b16 %v2133
    %v2202 = vunpack.c.l.b16 %v2134
    %v2203 = vunpack.c.l.b16 %v2135
    %v2204 = vunpack.c.l.b16 %v2136
    %v2205 = vunpack.c.l.b16 %v2137
    %v2206 = vunpack.c.l.b16 %v2138
    %v2207 = vunpack.c.l.b16 %v2139
    %v2208 = vunpack.c.l.b16 %v2140
    %v2209 = vunpack.c.l.b16 %v2141
    %v2210 = vunpack.c.l.b16 %v2142
    %v2211 = vunpack.c.l.b16 %v2143
    %v2212 = vunpack.c.l.b16 %v2144
    %v2213 = vunpack.c.l.b16 %v2145
    %v2214 = vunpack.c.l.b16 %v2146
    %v2215 = vunpack.c.l.b16 %v2147
    %v2216 = vpack.c.b16 %v2185, %v2184
    %v2217 = vpack.c.b16 %v2187, %v2186
    %v2218 = vpack.c.b16 %v2189, %v2188
    %v2219 = vpack.c.b16 %v2191, %v2190
    %v2220 = vpack.c.b16 %v2193, %v2192
    %v2221 = vpack.c.b16 %v2195, %v2194
    %v2222 = vpack.c.b16 %v2197, %v2196
    %v2223 = vpack.c.b16 %v2199, %v2198
    %v2224 = vpack.c.b16 %v2201, %v2200
    %v2225 = vpack.c.b16 %v2203, %v2202
    %v2226 = vpack.c.b16 %v2205, %v2204
    %v2227 = vpack.c.b16 %v2207, %v2206
    %v2228 = vpack.c.b16 %v2209, %v2208
    %v2229 = vpack.c.b16 %v2211, %v2210
    %v2230 = vpack.c.b16 %v2213, %v2212
    %v2231 = vpack.c.b16 %v2215, %v2214
    %2248 = vmatpush.bf16.msra.mxu0 %v2223
    %2249 = vmatpush.bf16.msra.mxu0 %v2222
    %2250 = vmatpush.bf16.msra.mxu0 %v2221
    %2251 = vmatpush.bf16.msra.mxu0 %v2220
    %2252 = vmatpush.bf16.msra.mxu0 %v2219
    %2253 = vmatpush.bf16.msra.mxu0 %v2218
    %2254 = vmatpush.bf16.msra.mxu0 %v2217
    %2255 = vmatpush.bf16.msra.mxu0 %v2216
    %2256 = vmatmul.bf16.gmra.mxu0 %v2114
    %v2257 = vpop.f32.mrf.mxu0
    %v2258 = vadd.f32 %v2150, %v2257
    %v2259 = vpop.f32.mrf.mxu0
    %2260 = vdwg.mxu0
    %2261 = vmatpush.bf16.msra.mxu0 %v2231
    %2262 = vmatpush.bf16.msra.mxu0 %v2230
    %2263 = vmatpush.bf16.msra.mxu0 %v2229
    %2264 = vmatpush.bf16.msra.mxu0 %v2228
    %2265 = vmatpush.bf16.msra.mxu0 %v2227
    %2266 = vmatpush.bf16.msra.mxu0 %v2226
    %2267 = vmatpush.bf16.msra.mxu0 %v2225
    %2268 = vmatpush.bf16.msra.mxu0 %v2224
    %2269 = vmatmul.bf16.gmra.mxu0 %v2115
    %v2270 = vpop.f32.mrf.mxu0
    %v2271 = vadd.f32 %v2258, %v2270
    %v2272 = vpop.f32.mrf.mxu0
    %2273 = vdwg.mxu0
    %2274 = vst [vmem:[#allocation2] sm:$0x3] %v2271
    // Predicated region
    $region30: #{fc_model_forward.1} parent=1 // pred_check
      _
    $region31: #{fc_model_forward.1} parent=1 // pred_check_branch
      %2276 = sbr.rel (0) target = $region33
    $region32: #{fc_model_forward.1} parent=1 // pred_region
      %2278 = vsyncadd [#allocation3], 0
      %s2280 = sshll.u32 [#allocation2], 4
      %s2281 = int_to_ptr.vmem [resolvable:$true] %s2280
      %s2282 = sshll.u32 %s7, 4
      %s2283 = int_to_ptr.hbm [resolvable:$true] %s2282
      %2285 = dma.vmem_to_hbm [thread:$0]  %s2281, 32, %s2283, [#allocation3]
    $region33: #{fc_model_forward.1} parent=1 // pred_fallthru
      _
    // Predicated region
    $region34: #{fc_model_forward.1} parent=1 // pred_check
      _
    $region35: #{fc_model_forward.1} parent=1 // pred_check_branch
      %2287 = sbr.rel (0) target = $region37
    $region36: #{fc_model_forward.1} parent=1 // pred_region
      %2289 = dma.done [#allocation3], 32
    $region37: #{fc_model_forward.1} parent=1 // pred_fallthru
      _
    %2290 = vsyncpa [#allocation3], 1

</llo_original>
